<compile_context>
chip_gen: v7x
topology: tpu7x:2x2x1
jax: 0.10.0
libtpu: 0.0.40
codegen_flags: <defaults>
</compile_context>

<pallas_src>
import jax
import jax.numpy as jnp
from jax.experimental import pallas as pl
from jax.experimental.pallas import tpu as pltpu


# ----------------------------------------------------------------------------
# Pallas kernel: one block of Bblk batch elements per grid step.
# ----------------------------------------------------------------------------
def _model_kernel(x_ref,        # (Bblk, T+4, F)  bf16, seq zero-padded 2/2
                  wf_ref,       # (5, F, C)       bf16 fused conv weight, C>=3F
                  bf_ref,       # (1, C)          f32 fused conv bias (zero-padded)
                  fcw_ref,      # (C, F)          bf16 fc weight (zero-padded rows)
                  fcb_ref,      # (1, F)          f32 fc bias
                  cw_ref,       # (1, F)          f32 classifier weight (row)
                  cb_ref,       # (1, 1)          f32 classifier bias
                  feat_ref,     # (Bblk, T, F)    f32
                  score_ref):   # (Bblk, T)       f32
    Bblk, Tp4, F = x_ref.shape
    T = Tp4 - 4
    C = wf_ref.shape[-1]
    M = Bblk * T

    x = x_ref[...]                                           # (Bblk, T+4, F) bf16

    # conv1 + conv2 + conv3 + channel concat, fused: accumulate 5 shifted-view
    # matmuls in f32 (no lane-axis concat / no 160-lane slab).
    h = jnp.zeros((M, C), jnp.float32)
    for j in range(5):
        xj = x[:, j:j + T, :].reshape(M, F)                  # leading-dim merge only
        h = h + jnp.dot(xj, wf_ref[j], preferred_element_type=jnp.float32)
    h = jnp.maximum(h + bf_ref[...], 0.0)                    # (M, C) relu

    # fc + relu (contraction is 128-aligned; padded rows of fcw are zero)
    z = jnp.dot(h.astype(jnp.bfloat16), fcw_ref[...],
                preferred_element_type=jnp.float32)
    z = jnp.maximum(z + fcb_ref[...], 0.0)                   # (M, F)
    z3 = z.reshape(Bblk, T, F)

    # classifier + sigmoid: VPU multiply + XLU lane reduce (no N=1 MXU matmul)
    s = jnp.sum(z3 * cw_ref[...], axis=-1) + cb_ref[...]     # (Bblk, T)
    s = jax.nn.sigmoid(s)

    feat_ref[...] = z3
    score_ref[...] = s


# ----------------------------------------------------------------------------
# Block picking: VMEM-aware, generation-aware.
# ----------------------------------------------------------------------------
def _cores_per_chip():
    """2 TensorCores (v7x / megacore parts) vs 1 (v5e / v6e)."""
    try:
        kind = jax.devices()[0].device_kind.lower().replace(" ", "")
    except Exception:
        return 1
    if "v7" in kind or "7x" in kind or "v4" in kind or "v5p" in kind:
        return 2
    return 1


def _vmem_bytes(bblk, T, F, C):
    rows = bblk * T
    xin = 2 * bblk * (T + 4) * F * 2          # bf16 input, double-buffered
    w = 2 * (5 * F * C * 2 + C * F * 2) + 4 * (C + 2 * F + 1)
    h = rows * C * 4                          # f32 intermediate
    z = rows * F * 4
    feat = 2 * rows * F * 4                   # f32 output, double-buffered
    score = 2 * rows * 4
    return xin + w + h + z + feat + score


def _pick_block_b(B, T, F, C, *, cores=1,
                  target_rows=2048, vmem_budget=20 * 1024 * 1024):
    """Biggest Bblk (~target_rows MXU rows) that fits VMEM; >=2 steps only on
    2-TC parts; blocks kept 8-aligned (score block is (Bblk, T)) or single-step."""
    bblk = max(1, min(B, target_rows // max(T, 1)))
    while bblk > 1 and _vmem_bytes(bblk, T, F, C) > vmem_budget:
        bblk -= 1
    if cores >= 2 and B > 1:
        bblk = min(bblk, (B + 1) // 2)        # feed both TensorCores
    if bblk < B:
        bblk8 = (bblk // 8) * 8
        bblk = bblk8 if bblk8 >= 8 else B     # too small to split cleanly
    return max(1, min(bblk, B))


# ----------------------------------------------------------------------------
# Wrapper
# ----------------------------------------------------------------------------
def model_concatcate_forward(x, packed_params, *, block_b=None):
    """x: (B, T, F) float32.  Returns (features (B,T,F) f32, scores (B,T,1) f32)."""
    B, T, F = x.shape
    wf, bfused, fcw, fcb, cw, cb = packed_params
    C = wf.shape[-1]

    cores = _cores_per_chip()
    Bblk = _pick_block_b(B, T, F, C, cores=cores) if block_b is None else block_b
    Bp = ((B + Bblk - 1) // Bblk) * Bblk

    # Wrapper-side: cast to bf16 once, zero-pad the seq halo (2/2) and batch.
    xp = jnp.pad(x.astype(jnp.bfloat16), ((0, Bp - B), (2, 2), (0, 0)))

    full = lambda shape: pl.BlockSpec(shape, lambda i: (0,) * len(shape))

    grid_spec = pltpu.PrefetchScalarGridSpec(
        num_scalar_prefetch=0,
        grid=(Bp // Bblk,),
        in_specs=[
            pl.BlockSpec((Bblk, T + 4, F), lambda i: (i, 0, 0)),   # x (padded)
            full((5, F, C)), full((1, C)),                         # fused conv
            full((C, F)), full((1, F)),                            # fc
            full((1, F)), full((1, 1)),                            # classifier
        ],
        out_specs=[
            pl.BlockSpec((Bblk, T, F), lambda i: (i, 0, 0)),       # features
            pl.BlockSpec((Bblk, T), lambda i: (i, 0)),             # scores
        ],
    )

    feat, score = pl.pallas_call(
        _model_kernel,
        out_shape=(
            jax.ShapeDtypeStruct((Bp, T, F), jnp.float32),
            jax.ShapeDtypeStruct((Bp, T), jnp.float32),
        ),
        grid_spec=grid_spec,
        compiler_params=pltpu.CompilerParams(
            dimension_semantics=("parallel",),
            vmem_limit_bytes=32 * 1024 * 1024),
    )(xp, wf, bfused, fcw, fcb, cw, cb)

    return feat[:B], score[:B, :, None]


# ----------------------------------------------------------------------------
# Parameters: xavier_uniform weights, zero biases (matching weights_init),
# plus wrapper-side packing of the fused block-structured conv weight.
# ----------------------------------------------------------------------------
def make_params(key, n_feature):
    F = n_feature

    def xavier(key, shape, fan_in, fan_out):
        bound = (6.0 / (fan_in + fan_out)) ** 0.5
        return jax.random.uniform(key, shape, jnp.float32, -bound, bound)

    k1, k2, k3, k4, k5 = jax.random.split(key, 5)

    # Conv1d weights in PyTorch are (out, in, K); store as (K, in, out).
    w1_t = xavier(k1, (F, F, 1), fan_in=F * 1, fan_out=F * 1)
    w2_t = xavier(k2, (F, F, 3), fan_in=F * 3, fan_out=F * 3)
    w3_t = xavier(k3, (F, F, 5), fan_in=F * 5, fan_out=F * 5)
    w1 = jnp.transpose(w1_t, (2, 1, 0))[0]          # (F_in, F_out)
    w2 = jnp.transpose(w2_t, (2, 1, 0))             # (3, F_in, F_out)
    w3 = jnp.transpose(w3_t, (2, 1, 0))             # (5, F_in, F_out)
    b1 = jnp.zeros((1, F), jnp.float32)
    b2 = jnp.zeros((1, F), jnp.float32)
    b3 = jnp.zeros((1, F), jnp.float32)

    # fc: Linear(3F -> F)  (see TODO note at top)
    fcw = xavier(k4, (F, 3 * F), fan_in=3 * F, fan_out=F).T   # (3F, F)
    fcb = jnp.zeros((1, F), jnp.float32)

    # classifier: Linear(F -> 1)
    cw = xavier(k5, (1, F), fan_in=F, fan_out=1).T            # (F, 1)
    cb = jnp.zeros((1, 1), jnp.float32)

    return (w1, b1, w2, b2, w3, b3, fcw, fcb, cw, cb)


def pack_params(raw, mxu_dtype=jnp.bfloat16):
    """Fused (5, F, C) block-structured conv weight (C = 3F lane-padded to 128),
    zero-padded bias / fc weight, classifier weight as a (1, F) row."""
    w1, b1, w2, b2, w3, b3, fcw, fcb, cw, cb = raw
    F = w1.shape[0]
    C = max(128, ((3 * F + 127) // 128) * 128)

    # Tap j of Wf multiplies x[t + j - 2]; column blocks are [conv1|conv2|conv3].
    Wf = jnp.zeros((5, F, C), jnp.float32)
    Wf = Wf.at[2, :, 0:F].set(w1)                    # conv1 (K=1): center tap
    Wf = Wf.at[1:4, :, F:2 * F].set(w2)              # conv2 (K=3): taps 1..3
    Wf = Wf.at[:, :, 2 * F:3 * F].set(w3)            # conv3 (K=5): taps 0..4

    bfused = jnp.zeros((1, C), jnp.float32)
    bfused = bfused.at[:, :3 * F].set(jnp.concatenate([b1, b2, b3], axis=-1))

    fcw_p = jnp.zeros((C, F), jnp.float32).at[:3 * F, :].set(fcw)

    return (Wf.astype(mxu_dtype), bfused,
            fcw_p.astype(mxu_dtype), fcb,
            cw.reshape(1, F), cb)


# ----------------------------------------------------------------------------
# Pure-JAX reference (same bf16-operand / f32-accumulate matmuls as the kernel).
# ----------------------------------------------------------------------------
def reference_forward(x, raw):
    w1, b1, w2, b2, w3, b3, fcw, fcb, cw, cb = raw
    B, T, F = x.shape
    bf16 = jnp.bfloat16

    def bdot(a, b):
        return jnp.dot(a.astype(bf16), b.astype(bf16),
                       preferred_element_type=jnp.float32)

    def conv(xb, w_k, pad):
        K = w_k.shape[0]
        xpad = jnp.pad(xb, ((pad, pad), (0, 0)))
        return sum(bdot(xpad[k:k + T], w_k[k]) for k in range(K))

    def one(xb):
        y1 = jax.nn.relu(bdot(xb, w1) + b1)
        y2 = jax.nn.relu(conv(xb, w2, 1) + b2)
        y3 = jax.nn.relu(conv(xb, w3, 2) + b3)
        h = jnp.concatenate([y1, y2, y3], axis=-1)
        z = jax.nn.relu(bdot(h, fcw) + fcb)
        s = jax.nn.sigmoid(jnp.dot(z, cw, preferred_element_type=jnp.float32) + cb)
        return z, s

    return jax.vmap(one)(x)


if __name__ == "__main__":
    B, T, n_feature = 8, 16, 32
    key = jax.random.PRNGKey(0)
    kx, kp = jax.random.split(key)

    x = jax.random.normal(kx, (B, T, n_feature), jnp.float32)
    raw = make_params(kp, n_feature)
    packed = pack_params(raw)

    feat, score = model_concatcate_forward(x, packed)
    feat, score = jax.block_until_ready((feat, score))

    ref_feat, ref_score = reference_forward(x, raw)
    assert feat.shape == (B, T, n_feature) and score.shape == (B, T, 1)
    assert jnp.allclose(feat, ref_feat, atol=1e-2, rtol=1e-2), \
        float(jnp.max(jnp.abs(feat - ref_feat)))
    assert jnp.allclose(score, ref_score[..., :1].reshape(B, T, 1), atol=1e-2, rtol=1e-2), \
        float(jnp.max(jnp.abs(score - ref_score.reshape(B, T, 1))))

    print("KERNEL_OK")
</pallas_src>

<mosaic_0001>
module attributes {stable_mosaic.version = 11 : i64} {
  func.func @_model_kernel(%arg0: i32, %arg1: memref<8x20x32xbf16, #tpu.memory_space<vmem>>, %arg2: memref<5x32x128xbf16, #tpu.memory_space<vmem>>, %arg3: memref<1x128xf32, #tpu.memory_space<vmem>>, %arg4: memref<128x32xbf16, #tpu.memory_space<vmem>>, %arg5: memref<1x32xf32, #tpu.memory_space<vmem>>, %arg6: memref<1x32xf32, #tpu.memory_space<vmem>>, %arg7: memref<1x1xf32, #tpu.memory_space<vmem>>, %arg8: memref<8x16x32xf32, #tpu.memory_space<vmem>>, %arg9: memref<8x16xf32, #tpu.memory_space<vmem>>) attributes {dimension_semantics = [#tpu.dimension_semantics<parallel>], iteration_bounds = array<i64: 1>, scalar_prefetch = 0 : i64, scratch_operands = 0 : i64, tpu.core_type = #tpu.core_type<tc>, window_params = [{transform_indices = @transform_0, window_bounds = array<i64: 8, 20, 32>}, {pipeline_mode = #tpu.pipeline_mode<synchronous>, transform_indices = @transform_1, window_bounds = array<i64: 5, 32, 128>}, {pipeline_mode = #tpu.pipeline_mode<synchronous>, transform_indices = @transform_2, window_bounds = array<i64: 1, 128>}, {pipeline_mode = #tpu.pipeline_mode<synchronous>, transform_indices = @transform_3, window_bounds = array<i64: 128, 32>}, {pipeline_mode = #tpu.pipeline_mode<synchronous>, transform_indices = @transform_4, window_bounds = array<i64: 1, 32>}, {pipeline_mode = #tpu.pipeline_mode<synchronous>, transform_indices = @transform_5, window_bounds = array<i64: 1, 32>}, {pipeline_mode = #tpu.pipeline_mode<synchronous>, transform_indices = @transform_6, window_bounds = array<i64: 1, 1>}, {transform_indices = @transform_7, window_bounds = array<i64: 8, 16, 32>}, {transform_indices = @transform_8, window_bounds = array<i64: 8, 16>}]} {
    %c0 = arith.constant 0 : index
    %c0_0 = arith.constant 0 : index
    %c0_1 = arith.constant 0 : index
    %0 = vector.load %arg1[%c0, %c0_0, %c0_1] : memref<8x20x32xbf16, #tpu.memory_space<vmem>>, vector<8x20x32xbf16>
    %cst = arith.constant 0.000000e+00 : f32
    %1 = vector.broadcast %cst : f32 to vector<128x128xf32>
    %2 = vector.extract_strided_slice %0 {offsets = [0, 0, 0], sizes = [8, 16, 32], strides = [1, 1, 1]} : vector<8x20x32xbf16> to vector<8x16x32xbf16>
    %3 = vector.shape_cast %2 : vector<8x16x32xbf16> to vector<128x32xbf16>
    %c0_2 = arith.constant 0 : index
    %c0_3 = arith.constant 0 : index
    %c0_4 = arith.constant 0 : index
    %4 = vector.load %arg2[%c0_2, %c0_3, %c0_4] : memref<5x32x128xbf16, #tpu.memory_space<vmem>>, vector<1x32x128xbf16>
    %5 = vector.shape_cast %4 : vector<1x32x128xbf16> to vector<32x128xbf16>
    %cst_5 = arith.constant dense<0.000000e+00> : vector<128x128xf32>
    %6 = tpu.matmul %3, %5, %cst_5 {dimension_numbers = #tpu.dot_dimension_numbers<[1], [0], [0], [1], [0, 0, 1, 1], [], []>} : vector<128x32xbf16>, vector<32x128xbf16>, vector<128x128xf32> -> vector<128x128xf32>
    %7 = arith.addf %1, %6 : vector<128x128xf32>
    %8 = vector.extract_strided_slice %0 {offsets = [0, 1, 0], sizes = [8, 16, 32], strides = [1, 1, 1]} : vector<8x20x32xbf16> to vector<8x16x32xbf16>
    %9 = vector.shape_cast %8 : vector<8x16x32xbf16> to vector<128x32xbf16>
    %c1 = arith.constant 1 : index
    %c0_6 = arith.constant 0 : index
    %c0_7 = arith.constant 0 : index
    %10 = vector.load %arg2[%c1, %c0_6, %c0_7] : memref<5x32x128xbf16, #tpu.memory_space<vmem>>, vector<1x32x128xbf16>
    %11 = vector.shape_cast %10 : vector<1x32x128xbf16> to vector<32x128xbf16>
    %cst_8 = arith.constant dense<0.000000e+00> : vector<128x128xf32>
    %12 = tpu.matmul %9, %11, %cst_8 {dimension_numbers = #tpu.dot_dimension_numbers<[1], [0], [0], [1], [0, 0, 1, 1], [], []>} : vector<128x32xbf16>, vector<32x128xbf16>, vector<128x128xf32> -> vector<128x128xf32>
    %13 = arith.addf %7, %12 : vector<128x128xf32>
    %14 = vector.extract_strided_slice %0 {offsets = [0, 2, 0], sizes = [8, 16, 32], strides = [1, 1, 1]} : vector<8x20x32xbf16> to vector<8x16x32xbf16>
    %15 = vector.shape_cast %14 : vector<8x16x32xbf16> to vector<128x32xbf16>
    %c2 = arith.constant 2 : index
    %c0_9 = arith.constant 0 : index
    %c0_10 = arith.constant 0 : index
    %16 = vector.load %arg2[%c2, %c0_9, %c0_10] : memref<5x32x128xbf16, #tpu.memory_space<vmem>>, vector<1x32x128xbf16>
    %17 = vector.shape_cast %16 : vector<1x32x128xbf16> to vector<32x128xbf16>
    %cst_11 = arith.constant dense<0.000000e+00> : vector<128x128xf32>
    %18 = tpu.matmul %15, %17, %cst_11 {dimension_numbers = #tpu.dot_dimension_numbers<[1], [0], [0], [1], [0, 0, 1, 1], [], []>} : vector<128x32xbf16>, vector<32x128xbf16>, vector<128x128xf32> -> vector<128x128xf32>
    %19 = arith.addf %13, %18 : vector<128x128xf32>
    %20 = vector.extract_strided_slice %0 {offsets = [0, 3, 0], sizes = [8, 16, 32], strides = [1, 1, 1]} : vector<8x20x32xbf16> to vector<8x16x32xbf16>
    %21 = vector.shape_cast %20 : vector<8x16x32xbf16> to vector<128x32xbf16>
    %c3 = arith.constant 3 : index
    %c0_12 = arith.constant 0 : index
    %c0_13 = arith.constant 0 : index
    %22 = vector.load %arg2[%c3, %c0_12, %c0_13] : memref<5x32x128xbf16, #tpu.memory_space<vmem>>, vector<1x32x128xbf16>
    %23 = vector.shape_cast %22 : vector<1x32x128xbf16> to vector<32x128xbf16>
    %cst_14 = arith.constant dense<0.000000e+00> : vector<128x128xf32>
    %24 = tpu.matmul %21, %23, %cst_14 {dimension_numbers = #tpu.dot_dimension_numbers<[1], [0], [0], [1], [0, 0, 1, 1], [], []>} : vector<128x32xbf16>, vector<32x128xbf16>, vector<128x128xf32> -> vector<128x128xf32>
    %25 = arith.addf %19, %24 : vector<128x128xf32>
    %26 = vector.extract_strided_slice %0 {offsets = [0, 4, 0], sizes = [8, 16, 32], strides = [1, 1, 1]} : vector<8x20x32xbf16> to vector<8x16x32xbf16>
    %27 = vector.shape_cast %26 : vector<8x16x32xbf16> to vector<128x32xbf16>
    %c4 = arith.constant 4 : index
    %c0_15 = arith.constant 0 : index
    %c0_16 = arith.constant 0 : index
    %28 = vector.load %arg2[%c4, %c0_15, %c0_16] : memref<5x32x128xbf16, #tpu.memory_space<vmem>>, vector<1x32x128xbf16>
    %29 = vector.shape_cast %28 : vector<1x32x128xbf16> to vector<32x128xbf16>
    %cst_17 = arith.constant dense<0.000000e+00> : vector<128x128xf32>
    %30 = tpu.matmul %27, %29, %cst_17 {dimension_numbers = #tpu.dot_dimension_numbers<[1], [0], [0], [1], [0, 0, 1, 1], [], []>} : vector<128x32xbf16>, vector<32x128xbf16>, vector<128x128xf32> -> vector<128x128xf32>
    %31 = arith.addf %25, %30 : vector<128x128xf32>
    %c0_18 = arith.constant 0 : index
    %c0_19 = arith.constant 0 : index
    %32 = vector.load %arg3[%c0_18, %c0_19] : memref<1x128xf32, #tpu.memory_space<vmem>>, vector<1x128xf32>
    %33 = vector.broadcast %32 : vector<1x128xf32> to vector<128x128xf32>
    %34 = arith.addf %31, %33 : vector<128x128xf32>
    %cst_20 = arith.constant 0.000000e+00 : f32
    %35 = vector.broadcast %cst_20 : f32 to vector<128x128xf32>
    %36 = arith.maximumf %34, %35 : vector<128x128xf32>
    %37 = arith.truncf %36 : vector<128x128xf32> to vector<128x128xbf16>
    %c0_21 = arith.constant 0 : index
    %c0_22 = arith.constant 0 : index
    %38 = vector.load %arg4[%c0_21, %c0_22] : memref<128x32xbf16, #tpu.memory_space<vmem>>, vector<128x32xbf16>
    %cst_23 = arith.constant dense<0.000000e+00> : vector<128x32xf32>
    %39 = tpu.matmul %37, %38, %cst_23 {dimension_numbers = #tpu.dot_dimension_numbers<[1], [0], [0], [1], [0, 0, 1, 1], [], []>} : vector<128x128xbf16>, vector<128x32xbf16>, vector<128x32xf32> -> vector<128x32xf32>
    %c0_24 = arith.constant 0 : index
    %c0_25 = arith.constant 0 : index
    %40 = vector.load %arg5[%c0_24, %c0_25] : memref<1x32xf32, #tpu.memory_space<vmem>>, vector<1x32xf32>
    %41 = vector.broadcast %40 : vector<1x32xf32> to vector<128x32xf32>
    %42 = arith.addf %39, %41 : vector<128x32xf32>
    %cst_26 = arith.constant 0.000000e+00 : f32
    %43 = vector.broadcast %cst_26 : f32 to vector<128x32xf32>
    %44 = arith.maximumf %42, %43 : vector<128x32xf32>
    %45 = vector.shape_cast %44 : vector<128x32xf32> to vector<8x16x32xf32>
    %c0_27 = arith.constant 0 : index
    %c0_28 = arith.constant 0 : index
    %46 = vector.load %arg6[%c0_27, %c0_28] : memref<1x32xf32, #tpu.memory_space<vmem>>, vector<1x32xf32>
    %47 = vector.shape_cast %46 : vector<1x32xf32> to vector<1x1x32xf32>
    %48 = vector.broadcast %47 : vector<1x1x32xf32> to vector<8x16x32xf32>
    %49 = arith.mulf %45, %48 : vector<8x16x32xf32>
    %cst_29 = arith.constant dense<0.000000e+00> : vector<8x16xf32>
    %50 = vector.multi_reduction <add>, %49, %cst_29 [2] : vector<8x16x32xf32> to vector<8x16xf32>
    %c0_30 = arith.constant 0 : index
    %c0_31 = arith.constant 0 : index
    %51 = vector.load %arg7[%c0_30, %c0_31] : memref<1x1xf32, #tpu.memory_space<vmem>>, vector<1x1xf32>
    %52 = vector.broadcast %51 : vector<1x1xf32> to vector<8x16xf32>
    %53 = arith.addf %50, %52 : vector<8x16xf32>
    %54 = arith.negf %53 : vector<8x16xf32>
    %55 = math.exp %54 : vector<8x16xf32>
    %cst_32 = arith.constant 1.000000e+00 : f32
    %56 = vector.broadcast %cst_32 : f32 to vector<8x16xf32>
    %57 = arith.addf %56, %55 : vector<8x16xf32>
    %58 = arith.divf %56, %57 : vector<8x16xf32>
    %c0_33 = arith.constant 0 : index
    %c0_34 = arith.constant 0 : index
    %c0_35 = arith.constant 0 : index
    %59 = vector.load %arg8[%c0_33, %c0_34, %c0_35] : memref<8x16x32xf32, #tpu.memory_space<vmem>>, vector<8x16x32xf32>
    tpu.vector_store %arg8[%c0_33, %c0_34, %c0_35], %45 {strides = array<i32>} : memref<8x16x32xf32, #tpu.memory_space<vmem>>, vector<8x16x32xf32>,
    %c0_36 = arith.constant 0 : index
    %c0_37 = arith.constant 0 : index
    %60 = vector.load %arg9[%c0_36, %c0_37] : memref<8x16xf32, #tpu.memory_space<vmem>>, vector<8x16xf32>
    tpu.vector_store %arg9[%c0_36, %c0_37], %58 {strides = array<i32>} : memref<8x16xf32, #tpu.memory_space<vmem>>, vector<8x16xf32>,
    return
  }
  func.func @transform_0(%arg0: i32) -> (i32, i32, i32) {
    %c0_i32 = arith.constant 0 : i32
    %c0_i32_0 = arith.constant 0 : i32
    %c0_i32_1 = arith.constant 0 : i32
    return %arg0, %c0_i32, %c0_i32_0 : i32, i32, i32
  }
  func.func @transform_1(%arg0: i32) -> (i32, i32, i32) {
    %c0_i32 = arith.constant 0 : i32
    %c0_i32_0 = arith.constant 0 : i32
    %c0_i32_1 = arith.constant 0 : i32
    %c0_i32_2 = arith.constant 0 : i32
    return %c0_i32, %c0_i32_0, %c0_i32_1 : i32, i32, i32
  }
  func.func @transform_2(%arg0: i32) -> (i32, i32) {
    %c0_i32 = arith.constant 0 : i32
    %c0_i32_0 = arith.constant 0 : i32
    %c0_i32_1 = arith.constant 0 : i32
    return %c0_i32, %c0_i32_0 : i32, i32
  }
  func.func @transform_3(%arg0: i32) -> (i32, i32) {
    %c0_i32 = arith.constant 0 : i32
    %c0_i32_0 = arith.constant 0 : i32
    %c0_i32_1 = arith.constant 0 : i32
    return %c0_i32, %c0_i32_0 : i32, i32
  }
  func.func @transform_4(%arg0: i32) -> (i32, i32) {
    %c0_i32 = arith.constant 0 : i32
    %c0_i32_0 = arith.constant 0 : i32
    %c0_i32_1 = arith.constant 0 : i32
    return %c0_i32, %c0_i32_0 : i32, i32
  }
  func.func @transform_5(%arg0: i32) -> (i32, i32) {
    %c0_i32 = arith.constant 0 : i32
    %c0_i32_0 = arith.constant 0 : i32
    %c0_i32_1 = arith.constant 0 : i32
    return %c0_i32, %c0_i32_0 : i32, i32
  }
  func.func @transform_6(%arg0: i32) -> (i32, i32) {
    %c0_i32 = arith.constant 0 : i32
    %c0_i32_0 = arith.constant 0 : i32
    %c0_i32_1 = arith.constant 0 : i32
    return %c0_i32, %c0_i32_0 : i32, i32
  }
  func.func @transform_7(%arg0: i32) -> (i32, i32, i32) {
    %c0_i32 = arith.constant 0 : i32
    %c0_i32_0 = arith.constant 0 : i32
    %c0_i32_1 = arith.constant 0 : i32
    return %arg0, %c0_i32, %c0_i32_0 : i32, i32, i32
  }
  func.func @transform_8(%arg0: i32) -> (i32, i32) {
    %c0_i32 = arith.constant 0 : i32
    %c0_i32_0 = arith.constant 0 : i32
    return %arg0, %c0_i32 : i32, i32
  }
}

</mosaic_0001>

<llo_original>
// kernel: tpu_custom_call.1
$region0: #{tpu_custom_call.1}
  #allocation0 [shape = 'u32[]', space=smem, size = 0x4, offset = 0x4, fixed_abs, tag = 'smem constant byte address 0x4 - core index']
  #allocation1 [shape = 'u32[144,128]{1,0:T(1,128)}', space=vmem, size = 0x12000, scoped, tag = 'internal scratch']
  #allocation2 [shape = 'f32[1,1]{1,0:T(1,128)S(1)}', space=vmem, size = 0x200, scoped, tag = 'scoped memory for tpu_custom_call.1']
  %s0 = inlined_call_operand.vmem [shape: bf16[8,20,32], index: 0, kind: input, shape index: {}]
  %s1 = inlined_call_operand.vmem [shape: bf16[5,32,128], index: 1, kind: input, shape index: {}]
  %s2 = inlined_call_operand.vmem [shape: f32[1,128], index: 2, kind: input, shape index: {}]
  %s3 = inlined_call_operand.vmem [shape: bf16[128,32], index: 3, kind: input, shape index: {}]
  %s4 = inlined_call_operand.vmem [shape: f32[1,32], index: 4, kind: input, shape index: {}]
  %s5 = inlined_call_operand.vmem [shape: f32[1,32], index: 5, kind: input, shape index: {}]
  %s6 = inlined_call_operand.<no memory space> [shape: f32[1,1], index: 6, kind: input, shape index: {}]
  %s7 = inlined_call_operand.hbm [shape: f32[8,16,32], index: 7, kind: output, shape index: {0}]
  %s8 = inlined_call_operand.hbm [shape: f32[8,16], index: 8, kind: output, shape index: {1}]
  %9 = xla_tuple %s7, %s8
  %s10 = sld [smem:[#allocation0]]
  $region46: #{tpu_custom_call.1} parent=0
    _
  %s12 = ssub.s32 1, %s10
  %s13 = scalar_select 0, %s12, %s10
  %v14 = vstv %s6
  %15 = vst [vmem:[#allocation2] sm:$0x1] %v14
  $region1: #{tpu_custom_call.1} parent=0
    #allocation3 [shape = 'u8[65536]{0}', space=vmem, size = 0x10000, scoped, tag = 'output window, operand 0, single buffered']
    #allocation4 [shape = 's32[1]{0}', space=sflag, size = 0x4, scoped, tag = 'scoped memory for tpu_custom_call.1']
    #allocation5 [shape = 'u8[4096]{0}', space=vmem, size = 0x1000, scoped, tag = 'output window, operand 1, single buffered']
    #allocation6 [shape = 's32[1]{0}', space=sflag, size = 0x4, scoped, tag = 'scoped memory for tpu_custom_call.1']
    %16 = vsyncpa [#allocation4], 0
    %17 = vsyncpa [#allocation6], 0
    // Predicated region
    $region2: #{tpu_custom_call.1} parent=1 // pred_check
      _
    $region3: #{tpu_custom_call.1} parent=1 // pred_check_branch
      %19 = sbr.rel (0) target = $region5
    $region4: #{tpu_custom_call.1} parent=1 // pred_region
      _
    $region5: #{tpu_custom_call.1} parent=1 // pred_fallthru
      _
    // Predicated region
    $region6: #{tpu_custom_call.1} parent=1 // pred_check
      _
    $region7: #{tpu_custom_call.1} parent=1 // pred_check_branch
      %21 = sbr.rel (0) target = $region9
    $region8: #{tpu_custom_call.1} parent=1 // pred_region
      _
    $region9: #{tpu_custom_call.1} parent=1 // pred_fallthru
      _
    // Predicated region
    $region10: #{tpu_custom_call.1} parent=1 // pred_check
      _
    $region11: #{tpu_custom_call.1} parent=1 // pred_check_branch
      %23 = sbr.rel (0) target = $region13
    $region12: #{tpu_custom_call.1} parent=1 // pred_region
      _
    $region13: #{tpu_custom_call.1} parent=1 // pred_fallthru
      _
    // Predicated region
    $region14: #{tpu_custom_call.1} parent=1 // pred_check
      _
    $region15: #{tpu_custom_call.1} parent=1 // pred_check_branch
      %25 = sbr.rel (0) target = $region17
    $region16: #{tpu_custom_call.1} parent=1 // pred_region
      _
    $region17: #{tpu_custom_call.1} parent=1 // pred_fallthru
      _
    // Predicated region
    $region18: #{tpu_custom_call.1} parent=1 // pred_check
      _
    $region19: #{tpu_custom_call.1} parent=1 // pred_check_branch
      %27 = sbr.rel (0) target = $region21
    $region20: #{tpu_custom_call.1} parent=1 // pred_region
      _
    $region21: #{tpu_custom_call.1} parent=1 // pred_fallthru
      _
    // Predicated region
    $region22: #{tpu_custom_call.1} parent=1 // pred_check
      _
    $region23: #{tpu_custom_call.1} parent=1 // pred_check_branch
      %29 = sbr.rel (0) target = $region25
    $region24: #{tpu_custom_call.1} parent=1 // pred_region
      _
    $region25: #{tpu_custom_call.1} parent=1 // pred_fallthru
      _
    // Predicated region
    $region26: #{tpu_custom_call.1} parent=1 // pred_check
      _
    $region27: #{tpu_custom_call.1} parent=1 // pred_check_branch
      %31 = sbr.rel (0) target = $region29
    $region28: #{tpu_custom_call.1} parent=1 // pred_region
      _
    $region29: #{tpu_custom_call.1} parent=1 // pred_fallthru
      _
    %v33 = vld [vmem:[%s0] sm:$0xf]
    %v34 = vld [vmem:[%s0 + $0x4] sm:$0xf]
    %v35 = vld [vmem:[%s0 + $0x8] sm:$0x3]
    %v36 = vld [vmem:[%s0 + $0xc] sm:$0xf]
    %v37 = vld [vmem:[%s0 + $0x10] sm:$0xf]
    %v38 = vld [vmem:[%s0 + $0x14] sm:$0x3]
    %v39 = vld [vmem:[%s0 + $0x18] sm:$0xf]
    %v40 = vld [vmem:[%s0 + $0x1c] sm:$0xf]
    %v41 = vld [vmem:[%s0 + $0x20] sm:$0x3]
    %v42 = vld [vmem:[%s0 + $0x24] sm:$0xf]
    %v43 = vld [vmem:[%s0 + $0x28] sm:$0xf]
    %v44 = vld [vmem:[%s0 + $0x2c] sm:$0x3]
    %v45 = vld [vmem:[%s0 + $0x30] sm:$0xf]
    %v46 = vld [vmem:[%s0 + $0x34] sm:$0xf]
    %v47 = vld [vmem:[%s0 + $0x38] sm:$0x3]
    %v48 = vld [vmem:[%s0 + $0x3c] sm:$0xf]
    %v49 = vld [vmem:[%s0 + $0x40] sm:$0xf]
    %v50 = vld [vmem:[%s0 + $0x44] sm:$0x3]
    %v51 = vld [vmem:[%s0 + $0x48] sm:$0xf]
    %v52 = vld [vmem:[%s0 + $0x4c] sm:$0xf]
    %v53 = vld [vmem:[%s0 + $0x50] sm:$0x3]
    %v54 = vld [vmem:[%s0 + $0x54] sm:$0xf]
    %v55 = vld [vmem:[%s0 + $0x58] sm:$0xf]
    %v56 = vld [vmem:[%s0 + $0x5c] sm:$0x3]
    %v57 = vld [vmem:[%s1] sm:$0xf]
    %v58 = vld [vmem:[%s1 + $0x4] sm:$0xf]
    %v59 = vld [vmem:[%s1 + $0x8] sm:$0xf]
    %v60 = vld [vmem:[%s1 + $0xc] sm:$0xf]
    %vm61 = vsmask.f32 3328
    %vm62 = vsmask.f32 7440
    %vm63 = vmor %vm61, %vm62
    %v65 = vshrl.u32 %v33, 16
    %v67 = vrot.slane %v65, 4
    %v68 = vshll.u32 %v33, 16
    %v70 = vrot.slane %v68, 5
    %v71 = vor.u32 %v67, %v70
    %v72 = vrot.slane %v71, 4
    %v74 = vshll.u32 %v34, 16
    %v76 = vrot.slane %v74, 5
    %v77 = vsel %vm63, %v72, %v76
    %v78 = vshrl.u32 %v34, 16
    %v80 = vrot.slane %v78, 4
    %v81 = vor.u32 %v80, %v76
    %v82 = vrot.slane %v81, 4
    %v84 = vshll.u32 %v35, 16
    %v86 = vrot.slane %v84, 5
    %v87 = vsel %vm63, %v82, %v86
    %v89 = vshrl.u32 %v36, 16
    %v91 = vrot.slane %v89, 4
    %v92 = vshll.u32 %v36, 16
    %v94 = vrot.slane %v92, 5
    %v95 = vor.u32 %v91, %v94
    %v96 = vrot.slane %v95, 4
    %v98 = vshll.u32 %v37, 16
    %v100 = vrot.slane %v98, 5
    %v101 = vsel %vm63, %v96, %v100
    %v102 = vshrl.u32 %v37, 16
    %v104 = vrot.slane %v102, 4
    %v105 = vor.u32 %v104, %v100
    %v106 = vrot.slane %v105, 4
    %v108 = vshll.u32 %v38, 16
    %v110 = vrot.slane %v108, 5
    %v111 = vsel %vm63, %v106, %v110
    %v113 = vshrl.u32 %v39, 16
    %v115 = vrot.slane %v113, 4
    %v116 = vshll.u32 %v39, 16
    %v118 = vrot.slane %v116, 5
    %v119 = vor.u32 %v115, %v118
    %v120 = vrot.slane %v119, 4
    %v122 = vshll.u32 %v40, 16
    %v124 = vrot.slane %v122, 5
    %v125 = vsel %vm63, %v120, %v124
    %v126 = vshrl.u32 %v40, 16
    %v128 = vrot.slane %v126, 4
    %v129 = vor.u32 %v128, %v124
    %v130 = vrot.slane %v129, 4
    %v132 = vshll.u32 %v41, 16
    %v134 = vrot.slane %v132, 5
    %v135 = vsel %vm63, %v130, %v134
    %v137 = vshrl.u32 %v42, 16
    %v139 = vrot.slane %v137, 4
    %v140 = vshll.u32 %v42, 16
    %v142 = vrot.slane %v140, 5
    %v143 = vor.u32 %v139, %v142
    %v144 = vrot.slane %v143, 4
    %v146 = vshll.u32 %v43, 16
    %v148 = vrot.slane %v146, 5
    %v149 = vsel %vm63, %v144, %v148
    %v150 = vshrl.u32 %v43, 16
    %v152 = vrot.slane %v150, 4
    %v153 = vor.u32 %v152, %v148
    %v154 = vrot.slane %v153, 4
    %v156 = vshll.u32 %v44, 16
    %v158 = vrot.slane %v156, 5
    %v159 = vsel %vm63, %v154, %v158
    %v161 = vshrl.u32 %v45, 16
    %v163 = vrot.slane %v161, 4
    %v164 = vshll.u32 %v45, 16
    %v166 = vrot.slane %v164, 5
    %v167 = vor.u32 %v163, %v166
    %v168 = vrot.slane %v167, 4
    %v170 = vshll.u32 %v46, 16
    %v172 = vrot.slane %v170, 5
    %v173 = vsel %vm63, %v168, %v172
    %v174 = vshrl.u32 %v46, 16
    %v176 = vrot.slane %v174, 4
    %v177 = vor.u32 %v176, %v172
    %v178 = vrot.slane %v177, 4
    %v180 = vshll.u32 %v47, 16
    %v182 = vrot.slane %v180, 5
    %v183 = vsel %vm63, %v178, %v182
    %v185 = vshrl.u32 %v48, 16
    %v187 = vrot.slane %v185, 4
    %v188 = vshll.u32 %v48, 16
    %v190 = vrot.slane %v188, 5
    %v191 = vor.u32 %v187, %v190
    %v192 = vrot.slane %v191, 4
    %v194 = vshll.u32 %v49, 16
    %v196 = vrot.slane %v194, 5
    %v197 = vsel %vm63, %v192, %v196
    %v198 = vshrl.u32 %v49, 16
    %v200 = vrot.slane %v198, 4
    %v201 = vor.u32 %v200, %v196
    %v202 = vrot.slane %v201, 4
    %v204 = vshll.u32 %v50, 16
    %v206 = vrot.slane %v204, 5
    %v207 = vsel %vm63, %v202, %v206
    %v209 = vshrl.u32 %v51, 16
    %v211 = vrot.slane %v209, 4
    %v212 = vshll.u32 %v51, 16
    %v214 = vrot.slane %v212, 5
    %v215 = vor.u32 %v211, %v214
    %v216 = vrot.slane %v215, 4
    %v218 = vshll.u32 %v52, 16
    %v220 = vrot.slane %v218, 5
    %v221 = vsel %vm63, %v216, %v220
    %v222 = vshrl.u32 %v52, 16
    %v224 = vrot.slane %v222, 4
    %v225 = vor.u32 %v224, %v220
    %v226 = vrot.slane %v225, 4
    %v228 = vshll.u32 %v53, 16
    %v230 = vrot.slane %v228, 5
    %v231 = vsel %vm63, %v226, %v230
    %v233 = vshrl.u32 %v54, 16
    %v235 = vrot.slane %v233, 4
    %v236 = vshll.u32 %v54, 16
    %v238 = vrot.slane %v236, 5
    %v239 = vor.u32 %v235, %v238
    %v240 = vrot.slane %v239, 4
    %v242 = vshll.u32 %v55, 16
    %v244 = vrot.slane %v242, 5
    %v245 = vsel %vm63, %v240, %v244
    %v246 = vshrl.u32 %v55, 16
    %v248 = vrot.slane %v246, 4
    %v249 = vor.u32 %v248, %v244
    %v250 = vrot.slane %v249, 4
    %v252 = vshll.u32 %v56, 16
    %v254 = vrot.slane %v252, 5
    %v255 = vsel %vm63, %v250, %v254
    %s256 = scalar_lea.vmem %s1, 16
    %v257 = vld [vmem:[%s256] sm:$0xf]
    %v258 = vld [vmem:[%s256 + $0x4] sm:$0xf]
    %v259 = vld [vmem:[%s256 + $0x8] sm:$0xf]
    %v260 = vld [vmem:[%s256 + $0xc] sm:$0xf]
    %v261 = vunpack.c.l.b16 %v77
    %v262 = vunpack.c.l.b16 %v87
    %v263 = vunpack.c.l.b16 %v101
    %v264 = vunpack.c.l.b16 %v111
    %v265 = vunpack.c.l.b16 %v125
    %v266 = vunpack.c.l.b16 %v135
    %v267 = vunpack.c.l.b16 %v149
    %v268 = vunpack.c.l.b16 %v159
    %v269 = vunpack.c.l.b16 %v173
    %v270 = vunpack.c.l.b16 %v183
    %v271 = vunpack.c.l.b16 %v197
    %v272 = vunpack.c.l.b16 %v207
    %v273 = vunpack.c.l.b16 %v221
    %v274 = vunpack.c.l.b16 %v231
    %v275 = vunpack.c.l.b16 %v245
    %v276 = vunpack.c.l.b16 %v255
    %v277 = vpack.c.b16 %v262, %v261
    %v278 = vpack.c.b16 %v264, %v263
    %v279 = vpack.c.b16 %v266, %v265
    %v280 = vpack.c.b16 %v268, %v267
    %v281 = vpack.c.b16 %v270, %v269
    %v282 = vpack.c.b16 %v272, %v271
    %v283 = vpack.c.b16 %v274, %v273
    %v284 = vpack.c.b16 %v276, %v275
    %v289 = vunpack.c.l.b16 %v257
    %v290 = vunpack.c.l.b16 %v258
    %v291 = vunpack.c.l.b16 %v259
    %v292 = vunpack.c.l.b16 %v260
    %v293 = vpack.c.b16 %v290, %v289
    %v294 = vpack.c.b16 %v292, %v291
    %vm297 = vcmask 261120
    %v299 = vsel %vm297, %v277, 0
    %v302 = vsel %vm297, %v278, 0
    %v305 = vsel %vm297, %v279, 0
    %v308 = vsel %vm297, %v280, 0
    %v311 = vsel %vm297, %v281, 0
    %v314 = vsel %vm297, %v282, 0
    %v317 = vsel %vm297, %v283, 0
    %v320 = vsel %vm297, %v284, 0
    %322 = vmatprep.subr.bf16.mxu0 0
    %323 = vmatpush1.bf16.msra.mxu0 %v293
    %324 = vmatprep.subr.bf16.mxu0 0
    %325 = vmatpush1.bf16.msra.mxu0 %v294
    %326 = vmatprep.subr.bf16.mxu0 0
    %327 = vmatpush1.bf16.msra.mxu0 0
    %328 = vmatprep.subr.bf16.mxu0 0
    %329 = vmatpush1.bf16.msra.mxu0 0
    %330 = vmatprep.subr.bf16.mxu0 0
    %331 = vmatpush1.bf16.msra.mxu0 0
    %332 = vmatprep.subr.bf16.mxu0 0
    %333 = vmatpush1.bf16.msra.mxu0 0
    %334 = vmatprep.subr.bf16.mxu0 0
    %335 = vmatpush1.bf16.msra.mxu0 0
    %336 = vmatprep.subr.bf16.mxu0 0
    %337 = vmatpush1.bf16.msra.mxu0 0
    %338 = vmatprep.subr.bf16.mxu0 0
    %339 = vmatpush1.bf16.msra.mxu0 0
    %340 = vmatprep.subr.bf16.mxu0 0
    %341 = vmatpush1.bf16.msra.mxu0 0
    %342 = vmatprep.subr.bf16.mxu0 0
    %343 = vmatpush1.bf16.msra.mxu0 0
    %344 = vmatprep.subr.bf16.mxu0 0
    %345 = vmatpush1.bf16.msra.mxu0 0
    %346 = vmatprep.subr.bf16.mxu0 0
    %347 = vmatpush1.bf16.msra.mxu0 0
    %348 = vmatprep.subr.bf16.mxu0 0
    %349 = vmatpush1.bf16.msra.mxu0 0
    %350 = vmatprep.subr.bf16.mxu0 0
    %351 = vmatpush1.bf16.msra.mxu0 0
    %352 = vmatprep.subr.bf16.mxu0 0
    %353 = vmatpush1.bf16.msra.mxu0 0
    %354 = vmatprep.mubr.bf16.mxu0 0
    %355 = vmatmul.mubr.bf16.gmra.mrb[0].mxu0 %v299
    %v356 = vpop.f32.mrb[0].mxu0
    %v357 = vadd.f32 0.0, %v356
    %v358 = vpop.f32.mrb[0].mxu0
    %v359 = vpop.f32.mrb[0].mxu0
    %v360 = vadd.f32 0.0, %v359
    %v361 = vpop.f32.mrb[0].mxu0
    %362 = vmatprep.mubr.bf16.mxu0 0
    %363 = vmatmul.mubr.bf16.gmra.mrb[0].mxu0 %v302
    %v364 = vpop.f32.mrb[0].mxu0
    %v365 = vadd.f32 0.0, %v364
    %v366 = vpop.f32.mrb[0].mxu0
    %v367 = vpop.f32.mrb[0].mxu0
    %v368 = vadd.f32 0.0, %v367
    %v369 = vpop.f32.mrb[0].mxu0
    %370 = vmatprep.mubr.bf16.mxu0 0
    %371 = vmatmul.mubr.bf16.gmra.mrb[0].mxu0 %v305
    %v372 = vpop.f32.mrb[0].mxu0
    %v373 = vadd.f32 0.0, %v372
    %v374 = vpop.f32.mrb[0].mxu0
    %v375 = vpop.f32.mrb[0].mxu0
    %v376 = vadd.f32 0.0, %v375
    %v377 = vpop.f32.mrb[0].mxu0
    %378 = vmatprep.mubr.bf16.mxu0 0
    %379 = vmatmul.mubr.bf16.gmra.mrb[0].mxu0 %v308
    %v380 = vpop.f32.mrb[0].mxu0
    %v381 = vadd.f32 0.0, %v380
    %v382 = vpop.f32.mrb[0].mxu0
    %v383 = vpop.f32.mrb[0].mxu0
    %v384 = vadd.f32 0.0, %v383
    %v385 = vpop.f32.mrb[0].mxu0
    %386 = vmatprep.mubr.bf16.mxu0 0
    %387 = vmatmul.mubr.bf16.gmra.mrb[0].mxu0 %v311
    %v388 = vpop.f32.mrb[0].mxu0
    %v389 = vadd.f32 0.0, %v388
    %v390 = vpop.f32.mrb[0].mxu0
    %v391 = vpop.f32.mrb[0].mxu0
    %v392 = vadd.f32 0.0, %v391
    %v393 = vpop.f32.mrb[0].mxu0
    %394 = vmatprep.mubr.bf16.mxu0 0
    %395 = vmatmul.mubr.bf16.gmra.mrb[0].mxu0 %v314
    %v396 = vpop.f32.mrb[0].mxu0
    %v397 = vadd.f32 0.0, %v396
    %v398 = vpop.f32.mrb[0].mxu0
    %v399 = vpop.f32.mrb[0].mxu0
    %v400 = vadd.f32 0.0, %v399
    %v401 = vpop.f32.mrb[0].mxu0
    %402 = vmatprep.mubr.bf16.mxu0 0
    %403 = vmatmul.mubr.bf16.gmra.mrb[0].mxu0 %v317
    %v404 = vpop.f32.mrb[0].mxu0
    %v405 = vadd.f32 0.0, %v404
    %v406 = vpop.f32.mrb[0].mxu0
    %v407 = vpop.f32.mrb[0].mxu0
    %v408 = vadd.f32 0.0, %v407
    %v409 = vpop.f32.mrb[0].mxu0
    %410 = vmatprep.mubr.bf16.mxu0 0
    %411 = vmatmul.mubr.bf16.gmra.mrb[0].mxu0 %v320
    %v412 = vpop.f32.mrb[0].mxu0
    %v413 = vadd.f32 0.0, %v412
    %v414 = vpop.f32.mrb[0].mxu0
    %v415 = vpop.f32.mrb[0].mxu0
    %v416 = vadd.f32 0.0, %v415
    %v417 = vpop.f32.mrb[0].mxu0
    %418 = vdwg.mxu0
    %v435 = vunpack.c.l.b16 %v33
    %v436 = vunpack.c.l.b16 %v34
    %v437 = vunpack.c.l.b16 %v36
    %v438 = vunpack.c.l.b16 %v37
    %v439 = vunpack.c.l.b16 %v39
    %v440 = vunpack.c.l.b16 %v40
    %v441 = vunpack.c.l.b16 %v42
    %v442 = vunpack.c.l.b16 %v43
    %v443 = vunpack.c.l.b16 %v45
    %v444 = vunpack.c.l.b16 %v46
    %v445 = vunpack.c.l.b16 %v48
    %v446 = vunpack.c.l.b16 %v49
    %v447 = vunpack.c.l.b16 %v51
    %v448 = vunpack.c.l.b16 %v52
    %v449 = vunpack.c.l.b16 %v54
    %v450 = vunpack.c.l.b16 %v55
    %v451 = vpack.c.b16 %v436, %v435
    %v452 = vpack.c.b16 %v438, %v437
    %v453 = vpack.c.b16 %v440, %v439
    %v454 = vpack.c.b16 %v442, %v441
    %v455 = vpack.c.b16 %v444, %v443
    %v456 = vpack.c.b16 %v446, %v445
    %v457 = vpack.c.b16 %v448, %v447
    %v458 = vpack.c.b16 %v450, %v449
    %v463 = vunpack.c.l.b16 %v57
    %v464 = vunpack.c.l.b16 %v58
    %v465 = vunpack.c.l.b16 %v59
    %v466 = vunpack.c.l.b16 %v60
    %v467 = vpack.c.b16 %v464, %v463
    %v468 = vpack.c.b16 %v466, %v465
    %v472 = vsel %vm297, %v451, 0
    %v475 = vsel %vm297, %v452, 0
    %v478 = vsel %vm297, %v453, 0
    %v481 = vsel %vm297, %v454, 0
    %v484 = vsel %vm297, %v455, 0
    %v487 = vsel %vm297, %v456, 0
    %v490 = vsel %vm297, %v457, 0
    %v493 = vsel %vm297, %v458, 0
    %495 = vmatprep.subr.bf16.mxu0 0
    %496 = vmatpush1.bf16.msra.mxu0 %v467
    %497 = vmatprep.subr.bf16.mxu0 0
    %498 = vmatpush1.bf16.msra.mxu0 %v468
    %499 = vmatprep.subr.bf16.mxu0 0
    %500 = vmatpush1.bf16.msra.mxu0 0
    %501 = vmatprep.subr.bf16.mxu0 0
    %502 = vmatpush1.bf16.msra.mxu0 0
    %503 = vmatprep.subr.bf16.mxu0 0
    %504 = vmatpush1.bf16.msra.mxu0 0
    %505 = vmatprep.subr.bf16.mxu0 0
    %506 = vmatpush1.bf16.msra.mxu0 0
    %507 = vmatprep.subr.bf16.mxu0 0
    %508 = vmatpush1.bf16.msra.mxu0 0
    %509 = vmatprep.subr.bf16.mxu0 0
    %510 = vmatpush1.bf16.msra.mxu0 0
    %511 = vmatprep.subr.bf16.mxu0 0
    %512 = vmatpush1.bf16.msra.mxu0 0
    %513 = vmatprep.subr.bf16.mxu0 0
    %514 = vmatpush1.bf16.msra.mxu0 0
    %515 = vmatprep.subr.bf16.mxu0 0
    %516 = vmatpush1.bf16.msra.mxu0 0
    %517 = vmatprep.subr.bf16.mxu0 0
    %518 = vmatpush1.bf16.msra.mxu0 0
    %519 = vmatprep.subr.bf16.mxu0 0
    %520 = vmatpush1.bf16.msra.mxu0 0
    %521 = vmatprep.subr.bf16.mxu0 0
    %522 = vmatpush1.bf16.msra.mxu0 0
    %523 = vmatprep.subr.bf16.mxu0 0
    %524 = vmatpush1.bf16.msra.mxu0 0
    %525 = vmatprep.subr.bf16.mxu0 0
    %526 = vmatpush1.bf16.msra.mxu0 0
    %527 = vmatprep.mubr.bf16.mxu0 0
    %528 = vmatmul.mubr.bf16.gmra.mrb[0].mxu0 %v472
    %v529 = vpop.f32.mrb[0].mxu0
    %v530 = vadd.f32 %v357, %v529
    %v531 = vpop.f32.mrb[0].mxu0
    %v532 = vpop.f32.mrb[0].mxu0
    %v533 = vadd.f32 %v360, %v532
    %v534 = vpop.f32.mrb[0].mxu0
    %535 = vmatprep.mubr.bf16.mxu0 0
    %536 = vmatmul.mubr.bf16.gmra.mrb[0].mxu0 %v475
    %v537 = vpop.f32.mrb[0].mxu0
    %v538 = vadd.f32 %v365, %v537
    %v539 = vpop.f32.mrb[0].mxu0
    %v540 = vpop.f32.mrb[0].mxu0
    %v541 = vadd.f32 %v368, %v540
    %v542 = vpop.f32.mrb[0].mxu0
    %543 = vmatprep.mubr.bf16.mxu0 0
    %544 = vmatmul.mubr.bf16.gmra.mrb[0].mxu0 %v478
    %v545 = vpop.f32.mrb[0].mxu0
    %v546 = vadd.f32 %v373, %v545
    %v547 = vpop.f32.mrb[0].mxu0
    %v548 = vpop.f32.mrb[0].mxu0
    %v549 = vadd.f32 %v376, %v548
    %v550 = vpop.f32.mrb[0].mxu0
    %551 = vmatprep.mubr.bf16.mxu0 0
    %552 = vmatmul.mubr.bf16.gmra.mrb[0].mxu0 %v481
    %v553 = vpop.f32.mrb[0].mxu0
    %v554 = vadd.f32 %v381, %v553
    %v555 = vpop.f32.mrb[0].mxu0
    %v556 = vpop.f32.mrb[0].mxu0
    %v557 = vadd.f32 %v384, %v556
    %v558 = vpop.f32.mrb[0].mxu0
    %559 = vmatprep.mubr.bf16.mxu0 0
    %560 = vmatmul.mubr.bf16.gmra.mrb[0].mxu0 %v484
    %v561 = vpop.f32.mrb[0].mxu0
    %v562 = vadd.f32 %v389, %v561
    %v563 = vpop.f32.mrb[0].mxu0
    %v564 = vpop.f32.mrb[0].mxu0
    %v565 = vadd.f32 %v392, %v564
    %v566 = vpop.f32.mrb[0].mxu0
    %567 = vmatprep.mubr.bf16.mxu0 0
    %568 = vmatmul.mubr.bf16.gmra.mrb[0].mxu0 %v487
    %v569 = vpop.f32.mrb[0].mxu0
    %v570 = vadd.f32 %v397, %v569
    %v571 = vpop.f32.mrb[0].mxu0
    %v572 = vpop.f32.mrb[0].mxu0
    %v573 = vadd.f32 %v400, %v572
    %v574 = vpop.f32.mrb[0].mxu0
    %575 = vmatprep.mubr.bf16.mxu0 0
    %576 = vmatmul.mubr.bf16.gmra.mrb[0].mxu0 %v490
    %v577 = vpop.f32.mrb[0].mxu0
    %v578 = vadd.f32 %v405, %v577
    %v579 = vpop.f32.mrb[0].mxu0
    %v580 = vpop.f32.mrb[0].mxu0
    %v581 = vadd.f32 %v408, %v580
    %v582 = vpop.f32.mrb[0].mxu0
    %583 = vmatprep.mubr.bf16.mxu0 0
    %584 = vmatmul.mubr.bf16.gmra.mrb[0].mxu0 %v493
    %v585 = vpop.f32.mrb[0].mxu0
    %v586 = vadd.f32 %v413, %v585
    %v587 = vpop.f32.mrb[0].mxu0
    %v588 = vpop.f32.mrb[0].mxu0
    %v589 = vadd.f32 %v416, %v588
    %v590 = vpop.f32.mrb[0].mxu0
    %591 = vdwg.mxu0
    %vm600 = vcmask 1042432
    %vm601 = vcmask 1046532
    %vm602 = vmor %vm600, %vm601
    %v603 = vrot.slane %v33, 5
    %v604 = vrot.slane %v603, 4
    %v605 = vrot.slane %v34, 5
    %v606 = vsel %vm602, %v604, %v605
    %v607 = vrot.slane %v605, 4
    %v608 = vrot.slane %v35, 5
    %v609 = vsel %vm602, %v607, %v608
    %v610 = vrot.slane %v36, 5
    %v611 = vrot.slane %v610, 4
    %v612 = vrot.slane %v37, 5
    %v613 = vsel %vm602, %v611, %v612
    %v614 = vrot.slane %v612, 4
    %v615 = vrot.slane %v38, 5
    %v616 = vsel %vm602, %v614, %v615
    %v617 = vrot.slane %v39, 5
    %v618 = vrot.slane %v617, 4
    %v619 = vrot.slane %v40, 5
    %v620 = vsel %vm602, %v618, %v619
    %v621 = vrot.slane %v619, 4
    %v622 = vrot.slane %v41, 5
    %v623 = vsel %vm602, %v621, %v622
    %v624 = vrot.slane %v42, 5
    %v625 = vrot.slane %v624, 4
    %v626 = vrot.slane %v43, 5
    %v627 = vsel %vm602, %v625, %v626
    %v628 = vrot.slane %v626, 4
    %v629 = vrot.slane %v44, 5
    %v630 = vsel %vm602, %v628, %v629
    %v631 = vrot.slane %v45, 5
    %v632 = vrot.slane %v631, 4
    %v633 = vrot.slane %v46, 5
    %v634 = vsel %vm602, %v632, %v633
    %v635 = vrot.slane %v633, 4
    %v636 = vrot.slane %v47, 5
    %v637 = vsel %vm602, %v635, %v636
    %v638 = vrot.slane %v48, 5
    %v639 = vrot.slane %v638, 4
    %v640 = vrot.slane %v49, 5
    %v641 = vsel %vm602, %v639, %v640
    %v642 = vrot.slane %v640, 4
    %v643 = vrot.slane %v50, 5
    %v644 = vsel %vm602, %v642, %v643
    %v645 = vrot.slane %v51, 5
    %v646 = vrot.slane %v645, 4
    %v647 = vrot.slane %v52, 5
    %v648 = vsel %vm602, %v646, %v647
    %v649 = vrot.slane %v647, 4
    %v650 = vrot.slane %v53, 5
    %v651 = vsel %vm602, %v649, %v650
    %v652 = vrot.slane %v54, 5
    %v653 = vrot.slane %v652, 4
    %v654 = vrot.slane %v55, 5
    %v655 = vsel %vm602, %v653, %v654
    %v656 = vrot.slane %v654, 4
    %v657 = vrot.slane %v56, 5
    %v658 = vsel %vm602, %v656, %v657
    %s659 = scalar_lea.vmem %s1, 32
    %v660 = vld [vmem:[%s659] sm:$0xf]
    %v661 = vld [vmem:[%s659 + $0x4] sm:$0xf]
    %v662 = vld [vmem:[%s659 + $0x8] sm:$0xf]
    %v663 = vld [vmem:[%s659 + $0xc] sm:$0xf]
    %v664 = vunpack.c.l.b16 %v606
    %v665 = vunpack.c.l.b16 %v609
    %v666 = vunpack.c.l.b16 %v613
    %v667 = vunpack.c.l.b16 %v616
    %v668 = vunpack.c.l.b16 %v620
    %v669 = vunpack.c.l.b16 %v623
    %v670 = vunpack.c.l.b16 %v627
    %v671 = vunpack.c.l.b16 %v630
    %v672 = vunpack.c.l.b16 %v634
    %v673 = vunpack.c.l.b16 %v637
    %v674 = vunpack.c.l.b16 %v641
    %v675 = vunpack.c.l.b16 %v644
    %v676 = vunpack.c.l.b16 %v648
    %v677 = vunpack.c.l.b16 %v651
    %v678 = vunpack.c.l.b16 %v655
    %v679 = vunpack.c.l.b16 %v658
    %v680 = vpack.c.b16 %v665, %v664
    %v681 = vpack.c.b16 %v667, %v666
    %v682 = vpack.c.b16 %v669, %v668
    %v683 = vpack.c.b16 %v671, %v670
    %v684 = vpack.c.b16 %v673, %v672
    %v685 = vpack.c.b16 %v675, %v674
    %v686 = vpack.c.b16 %v677, %v676
    %v687 = vpack.c.b16 %v679, %v678
    %v692 = vunpack.c.l.b16 %v660
    %v693 = vunpack.c.l.b16 %v661
    %v694 = vunpack.c.l.b16 %v662
    %v695 = vunpack.c.l.b16 %v663
    %v696 = vpack.c.b16 %v693, %v692
    %v697 = vpack.c.b16 %v695, %v694
    %v701 = vsel %vm297, %v680, 0
    %v704 = vsel %vm297, %v681, 0
    %v707 = vsel %vm297, %v682, 0
    %v710 = vsel %vm297, %v683, 0
    %v713 = vsel %vm297, %v684, 0
    %v716 = vsel %vm297, %v685, 0
    %v719 = vsel %vm297, %v686, 0
    %v722 = vsel %vm297, %v687, 0
    %724 = vmatprep.subr.bf16.mxu0 0
    %725 = vmatpush1.bf16.msra.mxu0 %v696
    %726 = vmatprep.subr.bf16.mxu0 0
    %727 = vmatpush1.bf16.msra.mxu0 %v697
    %728 = vmatprep.subr.bf16.mxu0 0
    %729 = vmatpush1.bf16.msra.mxu0 0
    %730 = vmatprep.subr.bf16.mxu0 0
    %731 = vmatpush1.bf16.msra.mxu0 0
    %732 = vmatprep.subr.bf16.mxu0 0
    %733 = vmatpush1.bf16.msra.mxu0 0
    %734 = vmatprep.subr.bf16.mxu0 0
    %735 = vmatpush1.bf16.msra.mxu0 0
    %736 = vmatprep.subr.bf16.mxu0 0
    %737 = vmatpush1.bf16.msra.mxu0 0
    %738 = vmatprep.subr.bf16.mxu0 0
    %739 = vmatpush1.bf16.msra.mxu0 0
    %740 = vmatprep.subr.bf16.mxu0 0
    %741 = vmatpush1.bf16.msra.mxu0 0
    %742 = vmatprep.subr.bf16.mxu0 0
    %743 = vmatpush1.bf16.msra.mxu0 0
    %744 = vmatprep.subr.bf16.mxu0 0
    %745 = vmatpush1.bf16.msra.mxu0 0
    %746 = vmatprep.subr.bf16.mxu0 0
    %747 = vmatpush1.bf16.msra.mxu0 0
    %748 = vmatprep.subr.bf16.mxu0 0
    %749 = vmatpush1.bf16.msra.mxu0 0
    %750 = vmatprep.subr.bf16.mxu0 0
    %751 = vmatpush1.bf16.msra.mxu0 0
    %752 = vmatprep.subr.bf16.mxu0 0
    %753 = vmatpush1.bf16.msra.mxu0 0
    %754 = vmatprep.subr.bf16.mxu0 0
    %755 = vmatpush1.bf16.msra.mxu0 0
    %756 = vmatprep.mubr.bf16.mxu0 0
    %757 = vmatmul.mubr.bf16.gmra.mrb[0].mxu0 %v701
    %v758 = vpop.f32.mrb[0].mxu0
    %v759 = vadd.f32 0.0, %v758
    %v760 = vpop.f32.mrb[0].mxu0
    %v761 = vpop.f32.mrb[0].mxu0
    %v762 = vadd.f32 0.0, %v761
    %v763 = vpop.f32.mrb[0].mxu0
    %764 = vmatprep.mubr.bf16.mxu0 0
    %765 = vmatmul.mubr.bf16.gmra.mrb[0].mxu0 %v704
    %v766 = vpop.f32.mrb[0].mxu0
    %v767 = vadd.f32 0.0, %v766
    %v768 = vpop.f32.mrb[0].mxu0
    %v769 = vpop.f32.mrb[0].mxu0
    %v770 = vadd.f32 0.0, %v769
    %v771 = vpop.f32.mrb[0].mxu0
    %772 = vmatprep.mubr.bf16.mxu0 0
    %773 = vmatmul.mubr.bf16.gmra.mrb[0].mxu0 %v707
    %v774 = vpop.f32.mrb[0].mxu0
    %v775 = vadd.f32 0.0, %v774
    %v776 = vpop.f32.mrb[0].mxu0
    %v777 = vpop.f32.mrb[0].mxu0
    %v778 = vadd.f32 0.0, %v777
    %v779 = vpop.f32.mrb[0].mxu0
    %780 = vmatprep.mubr.bf16.mxu0 0
    %781 = vmatmul.mubr.bf16.gmra.mrb[0].mxu0 %v710
    %v782 = vpop.f32.mrb[0].mxu0
    %v783 = vadd.f32 0.0, %v782
    %v784 = vpop.f32.mrb[0].mxu0
    %v785 = vpop.f32.mrb[0].mxu0
    %v786 = vadd.f32 0.0, %v785
    %v787 = vpop.f32.mrb[0].mxu0
    %788 = vmatprep.mubr.bf16.mxu0 0
    %789 = vmatmul.mubr.bf16.gmra.mrb[0].mxu0 %v713
    %v790 = vpop.f32.mrb[0].mxu0
    %v791 = vadd.f32 0.0, %v790
    %v792 = vpop.f32.mrb[0].mxu0
    %v793 = vpop.f32.mrb[0].mxu0
    %v794 = vadd.f32 0.0, %v793
    %v795 = vpop.f32.mrb[0].mxu0
    %796 = vmatprep.mubr.bf16.mxu0 0
    %797 = vmatmul.mubr.bf16.gmra.mrb[0].mxu0 %v716
    %v798 = vpop.f32.mrb[0].mxu0
    %v799 = vadd.f32 0.0, %v798
    %v800 = vpop.f32.mrb[0].mxu0
    %v801 = vpop.f32.mrb[0].mxu0
    %v802 = vadd.f32 0.0, %v801
    %v803 = vpop.f32.mrb[0].mxu0
    %804 = vmatprep.mubr.bf16.mxu0 0
    %805 = vmatmul.mubr.bf16.gmra.mrb[0].mxu0 %v719
    %v806 = vpop.f32.mrb[0].mxu0
    %v807 = vadd.f32 0.0, %v806
    %v808 = vpop.f32.mrb[0].mxu0
    %v809 = vpop.f32.mrb[0].mxu0
    %v810 = vadd.f32 0.0, %v809
    %v811 = vpop.f32.mrb[0].mxu0
    %812 = vmatprep.mubr.bf16.mxu0 0
    %813 = vmatmul.mubr.bf16.gmra.mrb[0].mxu0 %v722
    %v814 = vpop.f32.mrb[0].mxu0
    %v815 = vadd.f32 0.0, %v814
    %v816 = vpop.f32.mrb[0].mxu0
    %v817 = vpop.f32.mrb[0].mxu0
    %v818 = vadd.f32 0.0, %v817
    %v819 = vpop.f32.mrb[0].mxu0
    %820 = vdwg.mxu0
    %v821 = vadd.f32 %v530, %v759
    %v822 = vadd.f32 %v533, %v762
    %v823 = vadd.f32 %v538, %v767
    %v824 = vadd.f32 %v541, %v770
    %v825 = vadd.f32 %v546, %v775
    %v826 = vadd.f32 %v549, %v778
    %v827 = vadd.f32 %v554, %v783
    %v828 = vadd.f32 %v557, %v786
    %v829 = vadd.f32 %v562, %v791
    %v830 = vadd.f32 %v565, %v794
    %v831 = vadd.f32 %v570, %v799
    %v832 = vadd.f32 %v573, %v802
    %v833 = vadd.f32 %v578, %v807
    %v834 = vadd.f32 %v581, %v810
    %v835 = vadd.f32 %v586, %v815
    %v836 = vadd.f32 %v589, %v818
    %vm837 = vsmask.f32 2304
    %vm838 = vsmask.f32 6416
    %vm839 = vmor %vm837, %vm838
    %v840 = vrot.slane %v65, 5
    %v841 = vrot.slane %v68, 6
    %v842 = vor.u32 %v840, %v841
    %v843 = vrot.slane %v842, 4
    %v844 = vrot.slane %v78, 5
    %v845 = vrot.slane %v74, 6
    %v846 = vor.u32 %v844, %v845
    %v847 = vsel %vm839, %v843, %v846
    %v848 = vrot.slane %v846, 4
    %v849 = vshrl.u32 %v35, 16
    %v851 = vrot.slane %v849, 5
    %v852 = vrot.slane %v84, 6
    %v853 = vor.u32 %v851, %v852
    %v854 = vsel %vm839, %v848, %v853
    %v855 = vrot.slane %v89, 5
    %v856 = vrot.slane %v92, 6
    %v857 = vor.u32 %v855, %v856
    %v858 = vrot.slane %v857, 4
    %v859 = vrot.slane %v102, 5
    %v860 = vrot.slane %v98, 6
    %v861 = vor.u32 %v859, %v860
    %v862 = vsel %vm839, %v858, %v861
    %v863 = vrot.slane %v861, 4
    %v864 = vshrl.u32 %v38, 16
    %v866 = vrot.slane %v864, 5
    %v867 = vrot.slane %v108, 6
    %v868 = vor.u32 %v866, %v867
    %v869 = vsel %vm839, %v863, %v868
    %v870 = vrot.slane %v113, 5
    %v871 = vrot.slane %v116, 6
    %v872 = vor.u32 %v870, %v871
    %v873 = vrot.slane %v872, 4
    %v874 = vrot.slane %v126, 5
    %v875 = vrot.slane %v122, 6
    %v876 = vor.u32 %v874, %v875
    %v877 = vsel %vm839, %v873, %v876
    %v878 = vrot.slane %v876, 4
    %v879 = vshrl.u32 %v41, 16
    %v881 = vrot.slane %v879, 5
    %v882 = vrot.slane %v132, 6
    %v883 = vor.u32 %v881, %v882
    %v884 = vsel %vm839, %v878, %v883
    %v885 = vrot.slane %v137, 5
    %v886 = vrot.slane %v140, 6
    %v887 = vor.u32 %v885, %v886
    %v888 = vrot.slane %v887, 4
    %v889 = vrot.slane %v150, 5
    %v890 = vrot.slane %v146, 6
    %v891 = vor.u32 %v889, %v890
    %v892 = vsel %vm839, %v888, %v891
    %v893 = vrot.slane %v891, 4
    %v894 = vshrl.u32 %v44, 16
    %v896 = vrot.slane %v894, 5
    %v897 = vrot.slane %v156, 6
    %v898 = vor.u32 %v896, %v897
    %v899 = vsel %vm839, %v893, %v898
    %v900 = vrot.slane %v161, 5
    %v901 = vrot.slane %v164, 6
    %v902 = vor.u32 %v900, %v901
    %v903 = vrot.slane %v902, 4
    %v904 = vrot.slane %v174, 5
    %v905 = vrot.slane %v170, 6
    %v906 = vor.u32 %v904, %v905
    %v907 = vsel %vm839, %v903, %v906
    %v908 = vrot.slane %v906, 4
    %v909 = vshrl.u32 %v47, 16
    %v911 = vrot.slane %v909, 5
    %v912 = vrot.slane %v180, 6
    %v913 = vor.u32 %v911, %v912
    %v914 = vsel %vm839, %v908, %v913
    %v915 = vrot.slane %v185, 5
    %v916 = vrot.slane %v188, 6
    %v917 = vor.u32 %v915, %v916
    %v918 = vrot.slane %v917, 4
    %v919 = vrot.slane %v198, 5
    %v920 = vrot.slane %v194, 6
    %v921 = vor.u32 %v919, %v920
    %v922 = vsel %vm839, %v918, %v921
    %v923 = vrot.slane %v921, 4
    %v924 = vshrl.u32 %v50, 16
    %v926 = vrot.slane %v924, 5
    %v927 = vrot.slane %v204, 6
    %v928 = vor.u32 %v926, %v927
    %v929 = vsel %vm839, %v923, %v928
    %v930 = vrot.slane %v209, 5
    %v931 = vrot.slane %v212, 6
    %v932 = vor.u32 %v930, %v931
    %v933 = vrot.slane %v932, 4
    %v934 = vrot.slane %v222, 5
    %v935 = vrot.slane %v218, 6
    %v936 = vor.u32 %v934, %v935
    %v937 = vsel %vm839, %v933, %v936
    %v938 = vrot.slane %v936, 4
    %v939 = vshrl.u32 %v53, 16
    %v941 = vrot.slane %v939, 5
    %v942 = vrot.slane %v228, 6
    %v943 = vor.u32 %v941, %v942
    %v944 = vsel %vm839, %v938, %v943
    %v945 = vrot.slane %v233, 5
    %v946 = vrot.slane %v236, 6
    %v947 = vor.u32 %v945, %v946
    %v948 = vrot.slane %v947, 4
    %v949 = vrot.slane %v246, 5
    %v950 = vrot.slane %v242, 6
    %v951 = vor.u32 %v949, %v950
    %v952 = vsel %vm839, %v948, %v951
    %v953 = vrot.slane %v951, 4
    %v954 = vshrl.u32 %v56, 16
    %v956 = vrot.slane %v954, 5
    %v957 = vrot.slane %v252, 6
    %v958 = vor.u32 %v956, %v957
    %v959 = vsel %vm839, %v953, %v958
    %s960 = scalar_lea.vmem %s1, 48
    %v961 = vld [vmem:[%s960] sm:$0xf]
    %v962 = vld [vmem:[%s960 + $0x4] sm:$0xf]
    %v963 = vld [vmem:[%s960 + $0x8] sm:$0xf]
    %v964 = vld [vmem:[%s960 + $0xc] sm:$0xf]
    %v965 = vunpack.c.l.b16 %v847
    %v966 = vunpack.c.l.b16 %v854
    %v967 = vunpack.c.l.b16 %v862
    %v968 = vunpack.c.l.b16 %v869
    %v969 = vunpack.c.l.b16 %v877
    %v970 = vunpack.c.l.b16 %v884
    %v971 = vunpack.c.l.b16 %v892
    %v972 = vunpack.c.l.b16 %v899
    %v973 = vunpack.c.l.b16 %v907
    %v974 = vunpack.c.l.b16 %v914
    %v975 = vunpack.c.l.b16 %v922
    %v976 = vunpack.c.l.b16 %v929
    %v977 = vunpack.c.l.b16 %v937
    %v978 = vunpack.c.l.b16 %v944
    %v979 = vunpack.c.l.b16 %v952
    %v980 = vunpack.c.l.b16 %v959
    %v981 = vpack.c.b16 %v966, %v965
    %v982 = vpack.c.b16 %v968, %v967
    %v983 = vpack.c.b16 %v970, %v969
    %v984 = vpack.c.b16 %v972, %v971
    %v985 = vpack.c.b16 %v974, %v973
    %v986 = vpack.c.b16 %v976, %v975
    %v987 = vpack.c.b16 %v978, %v977
    %v988 = vpack.c.b16 %v980, %v979
    %v993 = vunpack.c.l.b16 %v961
    %v994 = vunpack.c.l.b16 %v962
    %v995 = vunpack.c.l.b16 %v963
    %v996 = vunpack.c.l.b16 %v964
    %v997 = vpack.c.b16 %v994, %v993
    %v998 = vpack.c.b16 %v996, %v995
    %v1002 = vsel %vm297, %v981, 0
    %v1005 = vsel %vm297, %v982, 0
    %v1008 = vsel %vm297, %v983, 0
    %v1011 = vsel %vm297, %v984, 0
    %v1014 = vsel %vm297, %v985, 0
    %v1017 = vsel %vm297, %v986, 0
    %v1020 = vsel %vm297, %v987, 0
    %v1023 = vsel %vm297, %v988, 0
    %1025 = vmatprep.subr.bf16.mxu0 0
    %1026 = vmatpush1.bf16.msra.mxu0 %v997
    %1027 = vmatprep.subr.bf16.mxu0 0
    %1028 = vmatpush1.bf16.msra.mxu0 %v998
    %1029 = vmatprep.subr.bf16.mxu0 0
    %1030 = vmatpush1.bf16.msra.mxu0 0
    %1031 = vmatprep.subr.bf16.mxu0 0
    %1032 = vmatpush1.bf16.msra.mxu0 0
    %1033 = vmatprep.subr.bf16.mxu0 0
    %1034 = vmatpush1.bf16.msra.mxu0 0
    %1035 = vmatprep.subr.bf16.mxu0 0
    %1036 = vmatpush1.bf16.msra.mxu0 0
    %1037 = vmatprep.subr.bf16.mxu0 0
    %1038 = vmatpush1.bf16.msra.mxu0 0
    %1039 = vmatprep.subr.bf16.mxu0 0
    %1040 = vmatpush1.bf16.msra.mxu0 0
    %1041 = vmatprep.subr.bf16.mxu0 0
    %1042 = vmatpush1.bf16.msra.mxu0 0
    %1043 = vmatprep.subr.bf16.mxu0 0
    %1044 = vmatpush1.bf16.msra.mxu0 0
    %1045 = vmatprep.subr.bf16.mxu0 0
    %1046 = vmatpush1.bf16.msra.mxu0 0
    %1047 = vmatprep.subr.bf16.mxu0 0
    %1048 = vmatpush1.bf16.msra.mxu0 0
    %1049 = vmatprep.subr.bf16.mxu0 0
    %1050 = vmatpush1.bf16.msra.mxu0 0
    %1051 = vmatprep.subr.bf16.mxu0 0
    %1052 = vmatpush1.bf16.msra.mxu0 0
    %1053 = vmatprep.subr.bf16.mxu0 0
    %1054 = vmatpush1.bf16.msra.mxu0 0
    %1055 = vmatprep.subr.bf16.mxu0 0
    %1056 = vmatpush1.bf16.msra.mxu0 0
    %1057 = vmatprep.mubr.bf16.mxu0 0
    %1058 = vmatmul.mubr.bf16.gmra.mrb[0].mxu0 %v1002
    %v1059 = vpop.f32.mrb[0].mxu0
    %v1060 = vadd.f32 0.0, %v1059
    %v1061 = vpop.f32.mrb[0].mxu0
    %v1062 = vpop.f32.mrb[0].mxu0
    %v1063 = vadd.f32 0.0, %v1062
    %v1064 = vpop.f32.mrb[0].mxu0
    %1065 = vmatprep.mubr.bf16.mxu0 0
    %1066 = vmatmul.mubr.bf16.gmra.mrb[0].mxu0 %v1005
    %v1067 = vpop.f32.mrb[0].mxu0
    %v1068 = vadd.f32 0.0, %v1067
    %v1069 = vpop.f32.mrb[0].mxu0
    %v1070 = vpop.f32.mrb[0].mxu0
    %v1071 = vadd.f32 0.0, %v1070
    %v1072 = vpop.f32.mrb[0].mxu0
    %1073 = vmatprep.mubr.bf16.mxu0 0
    %1074 = vmatmul.mubr.bf16.gmra.mrb[0].mxu0 %v1008
    %v1075 = vpop.f32.mrb[0].mxu0
    %v1076 = vadd.f32 0.0, %v1075
    %v1077 = vpop.f32.mrb[0].mxu0
    %v1078 = vpop.f32.mrb[0].mxu0
    %v1079 = vadd.f32 0.0, %v1078
    %v1080 = vpop.f32.mrb[0].mxu0
    %1081 = vmatprep.mubr.bf16.mxu0 0
    %1082 = vmatmul.mubr.bf16.gmra.mrb[0].mxu0 %v1011
    %v1083 = vpop.f32.mrb[0].mxu0
    %v1084 = vadd.f32 0.0, %v1083
    %v1085 = vpop.f32.mrb[0].mxu0
    %v1086 = vpop.f32.mrb[0].mxu0
    %v1087 = vadd.f32 0.0, %v1086
    %v1088 = vpop.f32.mrb[0].mxu0
    %1089 = vmatprep.mubr.bf16.mxu0 0
    %1090 = vmatmul.mubr.bf16.gmra.mrb[0].mxu0 %v1014
    %v1091 = vpop.f32.mrb[0].mxu0
    %v1092 = vadd.f32 0.0, %v1091
    %v1093 = vpop.f32.mrb[0].mxu0
    %v1094 = vpop.f32.mrb[0].mxu0
    %v1095 = vadd.f32 0.0, %v1094
    %v1096 = vpop.f32.mrb[0].mxu0
    %1097 = vmatprep.mubr.bf16.mxu0 0
    %1098 = vmatmul.mubr.bf16.gmra.mrb[0].mxu0 %v1017
    %v1099 = vpop.f32.mrb[0].mxu0
    %v1100 = vadd.f32 0.0, %v1099
    %v1101 = vpop.f32.mrb[0].mxu0
    %v1102 = vpop.f32.mrb[0].mxu0
    %v1103 = vadd.f32 0.0, %v1102
    %v1104 = vpop.f32.mrb[0].mxu0
    %1105 = vmatprep.mubr.bf16.mxu0 0
    %1106 = vmatmul.mubr.bf16.gmra.mrb[0].mxu0 %v1020
    %v1107 = vpop.f32.mrb[0].mxu0
    %v1108 = vadd.f32 0.0, %v1107
    %v1109 = vpop.f32.mrb[0].mxu0
    %v1110 = vpop.f32.mrb[0].mxu0
    %v1111 = vadd.f32 0.0, %v1110
    %v1112 = vpop.f32.mrb[0].mxu0
    %1113 = vmatprep.mubr.bf16.mxu0 0
    %1114 = vmatmul.mubr.bf16.gmra.mrb[0].mxu0 %v1023
    %v1115 = vpop.f32.mrb[0].mxu0
    %v1116 = vadd.f32 0.0, %v1115
    %v1117 = vpop.f32.mrb[0].mxu0
    %v1118 = vpop.f32.mrb[0].mxu0
    %v1119 = vadd.f32 0.0, %v1118
    %v1120 = vpop.f32.mrb[0].mxu0
    %1121 = vdwg.mxu0
    %v1122 = vadd.f32 %v821, %v1060
    %v1123 = vadd.f32 %v822, %v1063
    %v1124 = vadd.f32 %v823, %v1068
    %v1125 = vadd.f32 %v824, %v1071
    %v1126 = vadd.f32 %v825, %v1076
    %v1127 = vadd.f32 %v826, %v1079
    %v1128 = vadd.f32 %v827, %v1084
    %v1129 = vadd.f32 %v828, %v1087
    %v1130 = vadd.f32 %v829, %v1092
    %v1131 = vadd.f32 %v830, %v1095
    %v1132 = vadd.f32 %v831, %v1100
    %v1133 = vadd.f32 %v832, %v1103
    %v1134 = vadd.f32 %v833, %v1108
    %v1135 = vadd.f32 %v834, %v1111
    %v1136 = vadd.f32 %v835, %v1116
    %v1137 = vadd.f32 %v836, %v1119
    %vm1138 = vcmask 1041408
    %vm1139 = vcmask 1045508
    %vm1140 = vmor %vm1138, %vm1139
    %v1141 = vrot.slane %v33, 6
    %v1142 = vrot.slane %v1141, 4
    %v1143 = vrot.slane %v34, 6
    %v1144 = vsel %vm1140, %v1142, %v1143
    %v1145 = vrot.slane %v1143, 4
    %v1146 = vrot.slane %v35, 6
    %v1147 = vsel %vm1140, %v1145, %v1146
    %v1148 = vrot.slane %v36, 6
    %v1149 = vrot.slane %v1148, 4
    %v1150 = vrot.slane %v37, 6
    %v1151 = vsel %vm1140, %v1149, %v1150
    %v1152 = vrot.slane %v1150, 4
    %v1153 = vrot.slane %v38, 6
    %v1154 = vsel %vm1140, %v1152, %v1153
    %v1155 = vrot.slane %v39, 6
    %v1156 = vrot.slane %v1155, 4
    %v1157 = vrot.slane %v40, 6
    %v1158 = vsel %vm1140, %v1156, %v1157
    %v1159 = vrot.slane %v1157, 4
    %v1160 = vrot.slane %v41, 6
    %v1161 = vsel %vm1140, %v1159, %v1160
    %v1162 = vrot.slane %v42, 6
    %v1163 = vrot.slane %v1162, 4
    %v1164 = vrot.slane %v43, 6
    %v1165 = vsel %vm1140, %v1163, %v1164
    %v1166 = vrot.slane %v1164, 4
    %v1167 = vrot.slane %v44, 6
    %v1168 = vsel %vm1140, %v1166, %v1167
    %v1169 = vrot.slane %v45, 6
    %v1170 = vrot.slane %v1169, 4
    %v1171 = vrot.slane %v46, 6
    %v1172 = vsel %vm1140, %v1170, %v1171
    %v1173 = vrot.slane %v1171, 4
    %v1174 = vrot.slane %v47, 6
    %v1175 = vsel %vm1140, %v1173, %v1174
    %v1176 = vrot.slane %v48, 6
    %v1177 = vrot.slane %v1176, 4
    %v1178 = vrot.slane %v49, 6
    %v1179 = vsel %vm1140, %v1177, %v1178
    %v1180 = vrot.slane %v1178, 4
    %v1181 = vrot.slane %v50, 6
    %v1182 = vsel %vm1140, %v1180, %v1181
    %v1183 = vrot.slane %v51, 6
    %v1184 = vrot.slane %v1183, 4
    %v1185 = vrot.slane %v52, 6
    %v1186 = vsel %vm1140, %v1184, %v1185
    %v1187 = vrot.slane %v1185, 4
    %v1188 = vrot.slane %v53, 6
    %v1189 = vsel %vm1140, %v1187, %v1188
    %v1190 = vrot.slane %v54, 6
    %v1191 = vrot.slane %v1190, 4
    %v1192 = vrot.slane %v55, 6
    %v1193 = vsel %vm1140, %v1191, %v1192
    %v1194 = vrot.slane %v1192, 4
    %v1195 = vrot.slane %v56, 6
    %v1196 = vsel %vm1140, %v1194, %v1195
    %s1197 = scalar_lea.vmem %s1, 64
    %v1198 = vld [vmem:[%s1197] sm:$0xf]
    %v1199 = vld [vmem:[%s1197 + $0x4] sm:$0xf]
    %v1200 = vld [vmem:[%s1197 + $0x8] sm:$0xf]
    %v1201 = vld [vmem:[%s1197 + $0xc] sm:$0xf]
    %v1202 = vunpack.c.l.b16 %v1144
    %v1203 = vunpack.c.l.b16 %v1147
    %v1204 = vunpack.c.l.b16 %v1151
    %v1205 = vunpack.c.l.b16 %v1154
    %v1206 = vunpack.c.l.b16 %v1158
    %v1207 = vunpack.c.l.b16 %v1161
    %v1208 = vunpack.c.l.b16 %v1165
    %v1209 = vunpack.c.l.b16 %v1168
    %v1210 = vunpack.c.l.b16 %v1172
    %v1211 = vunpack.c.l.b16 %v1175
    %v1212 = vunpack.c.l.b16 %v1179
    %v1213 = vunpack.c.l.b16 %v1182
    %v1214 = vunpack.c.l.b16 %v1186
    %v1215 = vunpack.c.l.b16 %v1189
    %v1216 = vunpack.c.l.b16 %v1193
    %v1217 = vunpack.c.l.b16 %v1196
    %v1218 = vpack.c.b16 %v1203, %v1202
    %v1219 = vpack.c.b16 %v1205, %v1204
    %v1220 = vpack.c.b16 %v1207, %v1206
    %v1221 = vpack.c.b16 %v1209, %v1208
    %v1222 = vpack.c.b16 %v1211, %v1210
    %v1223 = vpack.c.b16 %v1213, %v1212
    %v1224 = vpack.c.b16 %v1215, %v1214
    %v1225 = vpack.c.b16 %v1217, %v1216
    %v1230 = vunpack.c.l.b16 %v1198
    %v1231 = vunpack.c.l.b16 %v1199
    %v1232 = vunpack.c.l.b16 %v1200
    %v1233 = vunpack.c.l.b16 %v1201
    %v1234 = vpack.c.b16 %v1231, %v1230
    %v1235 = vpack.c.b16 %v1233, %v1232
    %v1239 = vsel %vm297, %v1218, 0
    %v1242 = vsel %vm297, %v1219, 0
    %v1245 = vsel %vm297, %v1220, 0
    %v1248 = vsel %vm297, %v1221, 0
    %v1251 = vsel %vm297, %v1222, 0
    %v1254 = vsel %vm297, %v1223, 0
    %v1257 = vsel %vm297, %v1224, 0
    %v1260 = vsel %vm297, %v1225, 0
    %1262 = vmatprep.subr.bf16.mxu0 0
    %1263 = vmatpush1.bf16.msra.mxu0 %v1234
    %1264 = vmatprep.subr.bf16.mxu0 0
    %1265 = vmatpush1.bf16.msra.mxu0 %v1235
    %1266 = vmatprep.subr.bf16.mxu0 0
    %1267 = vmatpush1.bf16.msra.mxu0 0
    %1268 = vmatprep.subr.bf16.mxu0 0
    %1269 = vmatpush1.bf16.msra.mxu0 0
    %1270 = vmatprep.subr.bf16.mxu0 0
    %1271 = vmatpush1.bf16.msra.mxu0 0
    %1272 = vmatprep.subr.bf16.mxu0 0
    %1273 = vmatpush1.bf16.msra.mxu0 0
    %1274 = vmatprep.subr.bf16.mxu0 0
    %1275 = vmatpush1.bf16.msra.mxu0 0
    %1276 = vmatprep.subr.bf16.mxu0 0
    %1277 = vmatpush1.bf16.msra.mxu0 0
    %1278 = vmatprep.subr.bf16.mxu0 0
    %1279 = vmatpush1.bf16.msra.mxu0 0
    %1280 = vmatprep.subr.bf16.mxu0 0
    %1281 = vmatpush1.bf16.msra.mxu0 0
    %1282 = vmatprep.subr.bf16.mxu0 0
    %1283 = vmatpush1.bf16.msra.mxu0 0
    %1284 = vmatprep.subr.bf16.mxu0 0
    %1285 = vmatpush1.bf16.msra.mxu0 0
    %1286 = vmatprep.subr.bf16.mxu0 0
    %1287 = vmatpush1.bf16.msra.mxu0 0
    %1288 = vmatprep.subr.bf16.mxu0 0
    %1289 = vmatpush1.bf16.msra.mxu0 0
    %1290 = vmatprep.subr.bf16.mxu0 0
    %1291 = vmatpush1.bf16.msra.mxu0 0
    %1292 = vmatprep.subr.bf16.mxu0 0
    %1293 = vmatpush1.bf16.msra.mxu0 0
    %1294 = vmatprep.mubr.bf16.mxu0 0
    %1295 = vmatmul.mubr.bf16.gmra.mrb[0].mxu0 %v1239
    %v1296 = vpop.f32.mrb[0].mxu0
    %v1297 = vadd.f32 0.0, %v1296
    %v1298 = vpop.f32.mrb[0].mxu0
    %v1299 = vpop.f32.mrb[0].mxu0
    %v1300 = vadd.f32 0.0, %v1299
    %v1301 = vpop.f32.mrb[0].mxu0
    %1302 = vmatprep.mubr.bf16.mxu0 0
    %1303 = vmatmul.mubr.bf16.gmra.mrb[0].mxu0 %v1242
    %v1304 = vpop.f32.mrb[0].mxu0
    %v1305 = vadd.f32 0.0, %v1304
    %v1306 = vpop.f32.mrb[0].mxu0
    %v1307 = vpop.f32.mrb[0].mxu0
    %v1308 = vadd.f32 0.0, %v1307
    %v1309 = vpop.f32.mrb[0].mxu0
    %1310 = vmatprep.mubr.bf16.mxu0 0
    %1311 = vmatmul.mubr.bf16.gmra.mrb[0].mxu0 %v1245
    %v1312 = vpop.f32.mrb[0].mxu0
    %v1313 = vadd.f32 0.0, %v1312
    %v1314 = vpop.f32.mrb[0].mxu0
    %v1315 = vpop.f32.mrb[0].mxu0
    %v1316 = vadd.f32 0.0, %v1315
    %v1317 = vpop.f32.mrb[0].mxu0
    %1318 = vmatprep.mubr.bf16.mxu0 0
    %1319 = vmatmul.mubr.bf16.gmra.mrb[0].mxu0 %v1248
    %v1320 = vpop.f32.mrb[0].mxu0
    %v1321 = vadd.f32 0.0, %v1320
    %v1322 = vpop.f32.mrb[0].mxu0
    %v1323 = vpop.f32.mrb[0].mxu0
    %v1324 = vadd.f32 0.0, %v1323
    %v1325 = vpop.f32.mrb[0].mxu0
    %1326 = vmatprep.mubr.bf16.mxu0 0
    %1327 = vmatmul.mubr.bf16.gmra.mrb[0].mxu0 %v1251
    %v1328 = vpop.f32.mrb[0].mxu0
    %v1329 = vadd.f32 0.0, %v1328
    %v1330 = vpop.f32.mrb[0].mxu0
    %v1331 = vpop.f32.mrb[0].mxu0
    %v1332 = vadd.f32 0.0, %v1331
    %v1333 = vpop.f32.mrb[0].mxu0
    %1334 = vmatprep.mubr.bf16.mxu0 0
    %1335 = vmatmul.mubr.bf16.gmra.mrb[0].mxu0 %v1254
    %v1336 = vpop.f32.mrb[0].mxu0
    %v1337 = vadd.f32 0.0, %v1336
    %v1338 = vpop.f32.mrb[0].mxu0
    %v1339 = vpop.f32.mrb[0].mxu0
    %v1340 = vadd.f32 0.0, %v1339
    %v1341 = vpop.f32.mrb[0].mxu0
    %1342 = vmatprep.mubr.bf16.mxu0 0
    %1343 = vmatmul.mubr.bf16.gmra.mrb[0].mxu0 %v1257
    %v1344 = vpop.f32.mrb[0].mxu0
    %v1345 = vadd.f32 0.0, %v1344
    %v1346 = vpop.f32.mrb[0].mxu0
    %v1347 = vpop.f32.mrb[0].mxu0
    %v1348 = vadd.f32 0.0, %v1347
    %v1349 = vpop.f32.mrb[0].mxu0
    %1350 = vmatprep.mubr.bf16.mxu0 0
    %1351 = vmatmul.mubr.bf16.gmra.mrb[0].mxu0 %v1260
    %v1352 = vpop.f32.mrb[0].mxu0
    %v1353 = vadd.f32 0.0, %v1352
    %v1354 = vpop.f32.mrb[0].mxu0
    %v1355 = vpop.f32.mrb[0].mxu0
    %v1356 = vadd.f32 0.0, %v1355
    %v1357 = vpop.f32.mrb[0].mxu0
    %1358 = vdwg.mxu0
    %v1359 = vadd.f32 %v1122, %v1297
    %v1360 = vadd.f32 %v1123, %v1300
    %v1361 = vadd.f32 %v1124, %v1305
    %v1362 = vadd.f32 %v1125, %v1308
    %v1363 = vadd.f32 %v1126, %v1313
    %v1364 = vadd.f32 %v1127, %v1316
    %v1365 = vadd.f32 %v1128, %v1321
    %v1366 = vadd.f32 %v1129, %v1324
    %v1367 = vadd.f32 %v1130, %v1329
    %v1368 = vadd.f32 %v1131, %v1332
    %v1369 = vadd.f32 %v1132, %v1337
    %v1370 = vadd.f32 %v1133, %v1340
    %v1371 = vadd.f32 %v1134, %v1345
    %v1372 = vadd.f32 %v1135, %v1348
    %v1373 = vadd.f32 %v1136, %v1353
    %v1374 = vadd.f32 %v1137, %v1356
    %v1375 = vld [vmem:[%s2] sm:$0x1]
    %v1377 = vlaneseq
    %v1378 = vshrl.u32 %v1377, 7
    %v1379 = vsub.s32 0, %v1378
    %v1380 = vrot.slane %v1375, %v1379
    %v1382 = vadd.f32 %v1359, %v1380
    %v1383 = vadd.f32 %v1360, %v1380
    %v1384 = vadd.f32 %v1361, %v1380
    %v1385 = vadd.f32 %v1362, %v1380
    %v1386 = vadd.f32 %v1363, %v1380
    %v1387 = vadd.f32 %v1364, %v1380
    %v1388 = vadd.f32 %v1365, %v1380
    %v1389 = vadd.f32 %v1366, %v1380
    %v1390 = vadd.f32 %v1367, %v1380
    %v1391 = vadd.f32 %v1368, %v1380
    %v1392 = vadd.f32 %v1369, %v1380
    %v1393 = vadd.f32 %v1370, %v1380
    %v1394 = vadd.f32 %v1371, %v1380
    %v1395 = vadd.f32 %v1372, %v1380
    %v1396 = vadd.f32 %v1373, %v1380
    %v1397 = vadd.f32 %v1374, %v1380
    %v1398 = vmax.f32 %v1382, 0.0
    %v1399 = vmax.f32 %v1383, 0.0
    %v1400 = vmax.f32 %v1384, 0.0
    %v1401 = vmax.f32 %v1385, 0.0
    %v1402 = vmax.f32 %v1386, 0.0
    %v1403 = vmax.f32 %v1387, 0.0
    %v1404 = vmax.f32 %v1388, 0.0
    %v1405 = vmax.f32 %v1389, 0.0
    %v1406 = vmax.f32 %v1390, 0.0
    %v1407 = vmax.f32 %v1391, 0.0
    %v1408 = vmax.f32 %v1392, 0.0
    %v1409 = vmax.f32 %v1393, 0.0
    %v1410 = vmax.f32 %v1394, 0.0
    %v1411 = vmax.f32 %v1395, 0.0
    %v1412 = vmax.f32 %v1396, 0.0
    %v1413 = vmax.f32 %v1397, 0.0
    %v1414 = vpack.c.bf16 %v1399, %v1398
    %v1415 = vpack.c.bf16 %v1401, %v1400
    %v1416 = vpack.c.bf16 %v1403, %v1402
    %v1417 = vpack.c.bf16 %v1405, %v1404
    %v1418 = vpack.c.bf16 %v1407, %v1406
    %v1419 = vpack.c.bf16 %v1409, %v1408
    %v1420 = vpack.c.bf16 %v1411, %v1410
    %v1421 = vpack.c.bf16 %v1413, %v1412
    %v1422 = vld [vmem:[%s3] sm:$0xf]
    %v1423 = vld [vmem:[%s3 + $0x4] sm:$0xf]
    %v1424 = vld [vmem:[%s3 + $0x8] sm:$0xf]
    %v1425 = vld [vmem:[%s3 + $0xc] sm:$0xf]
    %v1426 = vld [vmem:[%s3 + $0x10] sm:$0xf]
    %v1427 = vld [vmem:[%s3 + $0x14] sm:$0xf]
    %v1428 = vld [vmem:[%s3 + $0x18] sm:$0xf]
    %v1429 = vld [vmem:[%s3 + $0x1c] sm:$0xf]
    %v1430 = vld [vmem:[%s3 + $0x20] sm:$0xf]
    %v1431 = vld [vmem:[%s3 + $0x24] sm:$0xf]
    %v1432 = vld [vmem:[%s3 + $0x28] sm:$0xf]
    %v1433 = vld [vmem:[%s3 + $0x2c] sm:$0xf]
    %v1434 = vld [vmem:[%s3 + $0x30] sm:$0xf]
    %v1435 = vld [vmem:[%s3 + $0x34] sm:$0xf]
    %v1436 = vld [vmem:[%s3 + $0x38] sm:$0xf]
    %v1437 = vld [vmem:[%s3 + $0x3c] sm:$0xf]
    %v1438 = vld [vmem:[%s4] sm:$0x1]
    %v1440 = vlaneseq
    %v1441 = vshrl.u32 %v1440, 7
    %v1442 = vsub.s32 0, %v1441
    %v1443 = vrot.slane %v1438, %v1442
    %v1461 = vunpack.c.l.b16 %v1422
    %v1462 = vunpack.c.l.b16 %v1423
    %v1463 = vunpack.c.l.b16 %v1424
    %v1464 = vunpack.c.l.b16 %v1425
    %v1465 = vunpack.c.l.b16 %v1426
    %v1466 = vunpack.c.l.b16 %v1427
    %v1467 = vunpack.c.l.b16 %v1428
    %v1468 = vunpack.c.l.b16 %v1429
    %v1469 = vunpack.c.l.b16 %v1430
    %v1470 = vunpack.c.l.b16 %v1431
    %v1471 = vunpack.c.l.b16 %v1432
    %v1472 = vunpack.c.l.b16 %v1433
    %v1473 = vunpack.c.l.b16 %v1434
    %v1474 = vunpack.c.l.b16 %v1435
    %v1475 = vunpack.c.l.b16 %v1436
    %v1476 = vunpack.c.l.b16 %v1437
    %v1477 = vpack.c.b16 %v1462, %v1461
    %v1478 = vpack.c.b16 %v1464, %v1463
    %v1479 = vpack.c.b16 %v1466, %v1465
    %v1480 = vpack.c.b16 %v1468, %v1467
    %v1481 = vpack.c.b16 %v1470, %v1469
    %v1482 = vpack.c.b16 %v1472, %v1471
    %v1483 = vpack.c.b16 %v1474, %v1473
    %v1484 = vpack.c.b16 %v1476, %v1475
    %1493 = vmatprep.subr.bf16.mxu0 0
    %1494 = vmatpush1.bf16.msra.mxu0 %v1477
    %1495 = vmatprep.subr.bf16.mxu0 0
    %1496 = vmatpush1.bf16.msra.mxu0 %v1478
    %1497 = vmatprep.subr.bf16.mxu0 0
    %1498 = vmatpush1.bf16.msra.mxu0 %v1479
    %1499 = vmatprep.subr.bf16.mxu0 0
    %1500 = vmatpush1.bf16.msra.mxu0 %v1480
    %1501 = vmatprep.subr.bf16.mxu0 0
    %1502 = vmatpush1.bf16.msra.mxu0 %v1481
    %1503 = vmatprep.subr.bf16.mxu0 0
    %1504 = vmatpush1.bf16.msra.mxu0 %v1482
    %1505 = vmatprep.subr.bf16.mxu0 0
    %1506 = vmatpush1.bf16.msra.mxu0 %v1483
    %1507 = vmatprep.subr.bf16.mxu0 0
    %1508 = vmatpush1.bf16.msra.mxu0 %v1484
    %1509 = vmatprep.subr.bf16.mxu0 0
    %1510 = vmatpush1.bf16.msra.mxu0 0
    %1511 = vmatprep.subr.bf16.mxu0 0
    %1512 = vmatpush1.bf16.msra.mxu0 0
    %1513 = vmatprep.subr.bf16.mxu0 0
    %1514 = vmatpush1.bf16.msra.mxu0 0
    %1515 = vmatprep.subr.bf16.mxu0 0
    %1516 = vmatpush1.bf16.msra.mxu0 0
    %1517 = vmatprep.subr.bf16.mxu0 0
    %1518 = vmatpush1.bf16.msra.mxu0 0
    %1519 = vmatprep.subr.bf16.mxu0 0
    %1520 = vmatpush1.bf16.msra.mxu0 0
    %1521 = vmatprep.subr.bf16.mxu0 0
    %1522 = vmatpush1.bf16.msra.mxu0 0
    %1523 = vmatprep.subr.bf16.mxu0 0
    %1524 = vmatpush1.bf16.msra.mxu0 0
    %1525 = vmatprep.mubr.bf16.mxu0 0
    %1526 = vmatmul.mubr.bf16.gmra.mrb[0].mxu0 %v1414
    %v1527 = vpop.f32.mrb[0].mxu0
    %v1528 = vadd.f32 %v1443, %v1527
    %v1529 = vpop.f32.mrb[0].mxu0
    %v1530 = vpop.f32.mrb[0].mxu0
    %v1531 = vadd.f32 %v1443, %v1530
    %v1532 = vpop.f32.mrb[0].mxu0
    %1533 = vmatprep.mubr.bf16.mxu0 0
    %1534 = vmatmul.mubr.bf16.gmra.mrb[0].mxu0 %v1415
    %v1535 = vpop.f32.mrb[0].mxu0
    %v1536 = vadd.f32 %v1443, %v1535
    %v1537 = vpop.f32.mrb[0].mxu0
    %v1538 = vpop.f32.mrb[0].mxu0
    %v1539 = vadd.f32 %v1443, %v1538
    %v1540 = vpop.f32.mrb[0].mxu0
    %1541 = vmatprep.mubr.bf16.mxu0 0
    %1542 = vmatmul.mubr.bf16.gmra.mrb[0].mxu0 %v1416
    %v1543 = vpop.f32.mrb[0].mxu0
    %v1544 = vadd.f32 %v1443, %v1543
    %v1545 = vpop.f32.mrb[0].mxu0
    %v1546 = vpop.f32.mrb[0].mxu0
    %v1547 = vadd.f32 %v1443, %v1546
    %v1548 = vpop.f32.mrb[0].mxu0
    %1549 = vmatprep.mubr.bf16.mxu0 0
    %1550 = vmatmul.mubr.bf16.gmra.mrb[0].mxu0 %v1417
    %v1551 = vpop.f32.mrb[0].mxu0
    %v1552 = vadd.f32 %v1443, %v1551
    %v1553 = vpop.f32.mrb[0].mxu0
    %v1554 = vpop.f32.mrb[0].mxu0
    %v1555 = vadd.f32 %v1443, %v1554
    %v1556 = vpop.f32.mrb[0].mxu0
    %1557 = vmatprep.mubr.bf16.mxu0 0
    %1558 = vmatmul.mubr.bf16.gmra.mrb[0].mxu0 %v1418
    %v1559 = vpop.f32.mrb[0].mxu0
    %v1560 = vadd.f32 %v1443, %v1559
    %v1561 = vpop.f32.mrb[0].mxu0
    %v1562 = vpop.f32.mrb[0].mxu0
    %v1563 = vadd.f32 %v1443, %v1562
    %v1564 = vpop.f32.mrb[0].mxu0
    %1565 = vmatprep.mubr.bf16.mxu0 0
    %1566 = vmatmul.mubr.bf16.gmra.mrb[0].mxu0 %v1419
    %v1567 = vpop.f32.mrb[0].mxu0
    %v1568 = vadd.f32 %v1443, %v1567
    %v1569 = vpop.f32.mrb[0].mxu0
    %v1570 = vpop.f32.mrb[0].mxu0
    %v1571 = vadd.f32 %v1443, %v1570
    %v1572 = vpop.f32.mrb[0].mxu0
    %1573 = vmatprep.mubr.bf16.mxu0 0
    %1574 = vmatmul.mubr.bf16.gmra.mrb[0].mxu0 %v1420
    %v1575 = vpop.f32.mrb[0].mxu0
    %v1576 = vadd.f32 %v1443, %v1575
    %v1577 = vpop.f32.mrb[0].mxu0
    %v1578 = vpop.f32.mrb[0].mxu0
    %v1579 = vadd.f32 %v1443, %v1578
    %v1580 = vpop.f32.mrb[0].mxu0
    %1581 = vmatprep.mubr.bf16.mxu0 0
    %1582 = vmatmul.mubr.bf16.gmra.mrb[0].mxu0 %v1421
    %v1583 = vpop.f32.mrb[0].mxu0
    %v1584 = vadd.f32 %v1443, %v1583
    %v1585 = vpop.f32.mrb[0].mxu0
    %v1586 = vpop.f32.mrb[0].mxu0
    %v1587 = vadd.f32 %v1443, %v1586
    %v1588 = vpop.f32.mrb[0].mxu0
    %1589 = vdwg.mxu0
    %v1590 = vmax.f32 %v1528, 0.0
    %v1591 = vmax.f32 %v1531, 0.0
    %v1592 = vmax.f32 %v1536, 0.0
    %v1593 = vmax.f32 %v1539, 0.0
    %v1594 = vmax.f32 %v1544, 0.0
    %v1595 = vmax.f32 %v1547, 0.0
    %v1596 = vmax.f32 %v1552, 0.0
    %v1597 = vmax.f32 %v1555, 0.0
    %v1598 = vmax.f32 %v1560, 0.0
    %v1599 = vmax.f32 %v1563, 0.0
    %v1600 = vmax.f32 %v1568, 0.0
    %v1601 = vmax.f32 %v1571, 0.0
    %v1602 = vmax.f32 %v1576, 0.0
    %v1603 = vmax.f32 %v1579, 0.0
    %v1604 = vmax.f32 %v1584, 0.0
    %v1605 = vmax.f32 %v1587, 0.0
    %v1606 = vld [vmem:[%s5] sm:$0x1]
    %v1608 = vlaneseq
    %v1609 = vshrl.u32 %v1608, 7
    %v1610 = vsub.s32 0, %v1609
    %v1611 = vrot.slane %v1606, %v1610
    %v1613 = vmul.f32 %v1590, %v1611
    %v1614 = vmul.f32 %v1591, %v1611
    %v1615 = vmul.f32 %v1592, %v1611
    %v1616 = vmul.f32 %v1593, %v1611
    %v1617 = vmul.f32 %v1594, %v1611
    %v1618 = vmul.f32 %v1595, %v1611
    %v1619 = vmul.f32 %v1596, %v1611
    %v1620 = vmul.f32 %v1597, %v1611
    %v1621 = vmul.f32 %v1598, %v1611
    %v1622 = vmul.f32 %v1599, %v1611
    %v1623 = vmul.f32 %v1600, %v1611
    %v1624 = vmul.f32 %v1601, %v1611
    %v1625 = vmul.f32 %v1602, %v1611
    %v1626 = vmul.f32 %v1603, %v1611
    %v1627 = vmul.f32 %v1604, %v1611
    %v1628 = vmul.f32 %v1605, %v1611
    %v1629 = vsel %vm297, %v1613, 0.0
    %1630 = vadd.xlane.f32.xlu0 %v1629
    %v1631 = vpop.xlane.xlu0 %1630
    %v1632 = vsel %vm297, %v1614, 0.0
    %1633 = vadd.xlane.f32.xlu0 %v1632
    %v1634 = vpop.xlane.xlu0 %1633
    %v1635 = vsel %vm297, %v1615, 0.0
    %1636 = vadd.xlane.f32.xlu0 %v1635
    %v1637 = vpop.xlane.xlu0 %1636
    %v1638 = vsel %vm297, %v1616, 0.0
    %1639 = vadd.xlane.f32.xlu0 %v1638
    %v1640 = vpop.xlane.xlu0 %1639
    %v1641 = vsel %vm297, %v1617, 0.0
    %1642 = vadd.xlane.f32.xlu0 %v1641
    %v1643 = vpop.xlane.xlu0 %1642
    %v1644 = vsel %vm297, %v1618, 0.0
    %1645 = vadd.xlane.f32.xlu0 %v1644
    %v1646 = vpop.xlane.xlu0 %1645
    %v1647 = vsel %vm297, %v1619, 0.0
    %1648 = vadd.xlane.f32.xlu0 %v1647
    %v1649 = vpop.xlane.xlu0 %1648
    %v1650 = vsel %vm297, %v1620, 0.0
    %1651 = vadd.xlane.f32.xlu0 %v1650
    %v1652 = vpop.xlane.xlu0 %1651
    %v1653 = vsel %vm297, %v1621, 0.0
    %1654 = vadd.xlane.f32.xlu0 %v1653
    %v1655 = vpop.xlane.xlu0 %1654
    %v1656 = vsel %vm297, %v1622, 0.0
    %1657 = vadd.xlane.f32.xlu0 %v1656
    %v1658 = vpop.xlane.xlu0 %1657
    %v1659 = vsel %vm297, %v1623, 0.0
    %1660 = vadd.xlane.f32.xlu0 %v1659
    %v1661 = vpop.xlane.xlu0 %1660
    %v1662 = vsel %vm297, %v1624, 0.0
    %1663 = vadd.xlane.f32.xlu0 %v1662
    %v1664 = vpop.xlane.xlu0 %1663
    %v1665 = vsel %vm297, %v1625, 0.0
    %1666 = vadd.xlane.f32.xlu0 %v1665
    %v1667 = vpop.xlane.xlu0 %1666
    %v1668 = vsel %vm297, %v1626, 0.0
    %1669 = vadd.xlane.f32.xlu0 %v1668
    %v1670 = vpop.xlane.xlu0 %1669
    %v1671 = vsel %vm297, %v1627, 0.0
    %1672 = vadd.xlane.f32.xlu0 %v1671
    %v1673 = vpop.xlane.xlu0 %1672
    %v1674 = vsel %vm297, %v1628, 0.0
    %1675 = vadd.xlane.f32.xlu0 %v1674
    %v1676 = vpop.xlane.xlu0 %1675
    %v1677 = vld [vmem:[#allocation2] sm:$0x1]
    %v1679 = vlaneseq
    %v1680 = vshrl.u32 %v1679, 7
    %v1681 = vsub.s32 0, %v1680
    %v1682 = vrot.slane %v1677, %v1681
    %1683 = vset.pattern.permute.xlu0 0
    %1684 = vperm.xlu0 %1683, %v1682
    %v1685 = vpop.permute.xlu0 %1684
    %v1687 = vadd.f32 %v1631, %v1685
    %v1688 = vadd.f32 %v1634, %v1685
    %v1689 = vadd.f32 %v1637, %v1685
    %v1690 = vadd.f32 %v1640, %v1685
    %v1691 = vadd.f32 %v1643, %v1685
    %v1692 = vadd.f32 %v1646, %v1685
    %v1693 = vadd.f32 %v1649, %v1685
    %v1694 = vadd.f32 %v1652, %v1685
    %v1695 = vadd.f32 %v1655, %v1685
    %v1696 = vadd.f32 %v1658, %v1685
    %v1697 = vadd.f32 %v1661, %v1685
    %v1698 = vadd.f32 %v1664, %v1685
    %v1699 = vadd.f32 %v1667, %v1685
    %v1700 = vadd.f32 %v1670, %v1685
    %v1701 = vadd.f32 %v1673, %v1685
    %v1702 = vadd.f32 %v1676, %v1685
    %v1703 = vxor.u32 %v1687, 2147483648
    %v1704 = vxor.u32 %v1688, 2147483648
    %v1705 = vxor.u32 %v1689, 2147483648
    %v1706 = vxor.u32 %v1690, 2147483648
    %v1707 = vxor.u32 %v1691, 2147483648
    %v1708 = vxor.u32 %v1692, 2147483648
    %v1709 = vxor.u32 %v1693, 2147483648
    %v1710 = vxor.u32 %v1694, 2147483648
    %v1711 = vxor.u32 %v1695, 2147483648
    %v1712 = vxor.u32 %v1696, 2147483648
    %v1713 = vxor.u32 %v1697, 2147483648
    %v1714 = vxor.u32 %v1698, 2147483648
    %v1715 = vxor.u32 %v1699, 2147483648
    %v1716 = vxor.u32 %v1700, 2147483648
    %v1717 = vxor.u32 %v1701, 2147483648
    %v1718 = vxor.u32 %v1702, 2147483648
    %v1719 = vmul.f32 %v1703, 1.442695
    %v1720 = vpow.pop %v1719
    %v1721 = vmul.f32 %v1704, 1.442695
    %v1722 = vpow.pop %v1721
    %v1723 = vmul.f32 %v1705, 1.442695
    %v1724 = vpow.pop %v1723
    %v1725 = vmul.f32 %v1706, 1.442695
    %v1726 = vpow.pop %v1725
    %v1727 = vmul.f32 %v1707, 1.442695
    %v1728 = vpow.pop %v1727
    %v1729 = vmul.f32 %v1708, 1.442695
    %v1730 = vpow.pop %v1729
    %v1731 = vmul.f32 %v1709, 1.442695
    %v1732 = vpow.pop %v1731
    %v1733 = vmul.f32 %v1710, 1.442695
    %v1734 = vpow.pop %v1733
    %v1735 = vmul.f32 %v1711, 1.442695
    %v1736 = vpow.pop %v1735
    %v1737 = vmul.f32 %v1712, 1.442695
    %v1738 = vpow.pop %v1737
    %v1739 = vmul.f32 %v1713, 1.442695
    %v1740 = vpow.pop %v1739
    %v1741 = vmul.f32 %v1714, 1.442695
    %v1742 = vpow.pop %v1741
    %v1743 = vmul.f32 %v1715, 1.442695
    %v1744 = vpow.pop %v1743
    %v1745 = vmul.f32 %v1716, 1.442695
    %v1746 = vpow.pop %v1745
    %v1747 = vmul.f32 %v1717, 1.442695
    %v1748 = vpow.pop %v1747
    %v1749 = vmul.f32 %v1718, 1.442695
    %v1750 = vpow.pop %v1749
    %v1751 = vadd.f32 %v1720, 1.0
    %v1752 = vadd.f32 %v1722, 1.0
    %v1753 = vadd.f32 %v1724, 1.0
    %v1754 = vadd.f32 %v1726, 1.0
    %v1755 = vadd.f32 %v1728, 1.0
    %v1756 = vadd.f32 %v1730, 1.0
    %v1757 = vadd.f32 %v1732, 1.0
    %v1758 = vadd.f32 %v1734, 1.0
    %v1759 = vadd.f32 %v1736, 1.0
    %v1760 = vadd.f32 %v1738, 1.0
    %v1761 = vadd.f32 %v1740, 1.0
    %v1762 = vadd.f32 %v1742, 1.0
    %v1763 = vadd.f32 %v1744, 1.0
    %v1764 = vadd.f32 %v1746, 1.0
    %v1765 = vadd.f32 %v1748, 1.0
    %v1766 = vadd.f32 %v1750, 1.0
    %v1767 = vrcp.pop %v1751
    %v1768 = vmul.f32 1.0, %v1767
    %v1769 = vrcp.pop %v1752
    %v1770 = vmul.f32 1.0, %v1769
    %v1771 = vrcp.pop %v1753
    %v1772 = vmul.f32 1.0, %v1771
    %v1773 = vrcp.pop %v1754
    %v1774 = vmul.f32 1.0, %v1773
    %v1775 = vrcp.pop %v1755
    %v1776 = vmul.f32 1.0, %v1775
    %v1777 = vrcp.pop %v1756
    %v1778 = vmul.f32 1.0, %v1777
    %v1779 = vrcp.pop %v1757
    %v1780 = vmul.f32 1.0, %v1779
    %v1781 = vrcp.pop %v1758
    %v1782 = vmul.f32 1.0, %v1781
    %v1783 = vrcp.pop %v1759
    %v1784 = vmul.f32 1.0, %v1783
    %v1785 = vrcp.pop %v1760
    %v1786 = vmul.f32 1.0, %v1785
    %v1787 = vrcp.pop %v1761
    %v1788 = vmul.f32 1.0, %v1787
    %v1789 = vrcp.pop %v1762
    %v1790 = vmul.f32 1.0, %v1789
    %v1791 = vrcp.pop %v1763
    %v1792 = vmul.f32 1.0, %v1791
    %v1793 = vrcp.pop %v1764
    %v1794 = vmul.f32 1.0, %v1793
    %v1795 = vrcp.pop %v1765
    %v1796 = vmul.f32 1.0, %v1795
    %v1797 = vrcp.pop %v1766
    %v1798 = vmul.f32 1.0, %v1797
    %1799 = vst.msk [vmem:[#allocation3] sm:$0xff] %vm297, %v1590
    %1800 = vst.msk [vmem:[#allocation3 + $0x8] sm:$0xff] %vm297, %v1591
    %1801 = vst.msk [vmem:[#allocation3 + $0x10] sm:$0xff] %vm297, %v1592
    %1802 = vst.msk [vmem:[#allocation3 + $0x18] sm:$0xff] %vm297, %v1593
    %1803 = vst.msk [vmem:[#allocation3 + $0x20] sm:$0xff] %vm297, %v1594
    %1804 = vst.msk [vmem:[#allocation3 + $0x28] sm:$0xff] %vm297, %v1595
    %1805 = vst.msk [vmem:[#allocation3 + $0x30] sm:$0xff] %vm297, %v1596
    %1806 = vst.msk [vmem:[#allocation3 + $0x38] sm:$0xff] %vm297, %v1597
    %1807 = vst.msk [vmem:[#allocation3 + $0x40] sm:$0xff] %vm297, %v1598
    %1808 = vst.msk [vmem:[#allocation3 + $0x48] sm:$0xff] %vm297, %v1599
    %1809 = vst.msk [vmem:[#allocation3 + $0x50] sm:$0xff] %vm297, %v1600
    %1810 = vst.msk [vmem:[#allocation3 + $0x58] sm:$0xff] %vm297, %v1601
    %1811 = vst.msk [vmem:[#allocation3 + $0x60] sm:$0xff] %vm297, %v1602
    %1812 = vst.msk [vmem:[#allocation3 + $0x68] sm:$0xff] %vm297, %v1603
    %1813 = vst.msk [vmem:[#allocation3 + $0x70] sm:$0xff] %vm297, %v1604
    %1814 = vst.msk [vmem:[#allocation3 + $0x78] sm:$0xff] %vm297, %v1605
    %v1831 = vlaneseq
    %v1832 = vand.u32 %v1831, 127
    %v1833 = vlaneseq
    %v1834 = vshrl.u32 %v1833, 7
    %v1835 = vsub.s32 %v1832, %v1834
    %v1836 = vrot.slane %v1768, %v1835
    %v1837 = vadd.s32 %v1832, 4294967288
    %v1838 = vlaneseq
    %v1839 = vshrl.u32 %v1838, 7
    %v1840 = vsub.s32 %v1837, %v1839
    %v1841 = vrot.slane %v1770, %v1840
    %vm1842 = vcmask 130112
    %v1843 = vsel %vm1842, %v1841, %v1836
    %v1844 = vlaneseq
    %v1845 = vshrl.u32 %v1844, 7
    %v1846 = vsub.s32 %v1832, %v1845
    %v1847 = vrot.slane %v1772, %v1846
    %v1848 = vlaneseq
    %v1849 = vshrl.u32 %v1848, 7
    %v1850 = vsub.s32 %v1837, %v1849
    %v1851 = vrot.slane %v1774, %v1850
    %v1852 = vsel %vm1842, %v1851, %v1847
    %v1853 = vlaneseq
    %v1854 = vshrl.u32 %v1853, 7
    %v1855 = vsub.s32 %v1832, %v1854
    %v1856 = vrot.slane %v1776, %v1855
    %v1857 = vlaneseq
    %v1858 = vshrl.u32 %v1857, 7
    %v1859 = vsub.s32 %v1837, %v1858
    %v1860 = vrot.slane %v1778, %v1859
    %v1861 = vsel %vm1842, %v1860, %v1856
    %v1862 = vlaneseq
    %v1863 = vshrl.u32 %v1862, 7
    %v1864 = vsub.s32 %v1832, %v1863
    %v1865 = vrot.slane %v1780, %v1864
    %v1866 = vlaneseq
    %v1867 = vshrl.u32 %v1866, 7
    %v1868 = vsub.s32 %v1837, %v1867
    %v1869 = vrot.slane %v1782, %v1868
    %v1870 = vsel %vm1842, %v1869, %v1865
    %v1871 = vlaneseq
    %v1872 = vshrl.u32 %v1871, 7
    %v1873 = vsub.s32 %v1832, %v1872
    %v1874 = vrot.slane %v1784, %v1873
    %v1875 = vlaneseq
    %v1876 = vshrl.u32 %v1875, 7
    %v1877 = vsub.s32 %v1837, %v1876
    %v1878 = vrot.slane %v1786, %v1877
    %v1879 = vsel %vm1842, %v1878, %v1874
    %v1880 = vlaneseq
    %v1881 = vshrl.u32 %v1880, 7
    %v1882 = vsub.s32 %v1832, %v1881
    %v1883 = vrot.slane %v1788, %v1882
    %v1884 = vlaneseq
    %v1885 = vshrl.u32 %v1884, 7
    %v1886 = vsub.s32 %v1837, %v1885
    %v1887 = vrot.slane %v1790, %v1886
    %v1888 = vsel %vm1842, %v1887, %v1883
    %v1889 = vlaneseq
    %v1890 = vshrl.u32 %v1889, 7
    %v1891 = vsub.s32 %v1832, %v1890
    %v1892 = vrot.slane %v1792, %v1891
    %v1893 = vlaneseq
    %v1894 = vshrl.u32 %v1893, 7
    %v1895 = vsub.s32 %v1837, %v1894
    %v1896 = vrot.slane %v1794, %v1895
    %v1897 = vsel %vm1842, %v1896, %v1892
    %v1898 = vlaneseq
    %v1899 = vshrl.u32 %v1898, 7
    %v1900 = vsub.s32 %v1832, %v1899
    %v1901 = vrot.slane %v1796, %v1900
    %v1902 = vlaneseq
    %v1903 = vshrl.u32 %v1902, 7
    %v1904 = vsub.s32 %v1837, %v1903
    %v1905 = vrot.slane %v1798, %v1904
    %v1906 = vsel %vm1842, %v1905, %v1901
    %vm1907 = vcmask 1041409
    %v1908 = vsel %vm1907, %v1852, %v1843
    %vm1909 = vcmask 1042434
    %v1910 = vsel %vm1909, %v1861, %v1908
    %vm1911 = vcmask 1043459
    %v1912 = vsel %vm1911, %v1870, %v1910
    %vm1913 = vcmask 1044484
    %v1914 = vsel %vm1913, %v1879, %v1912
    %vm1915 = vcmask 1045509
    %v1916 = vsel %vm1915, %v1888, %v1914
    %vm1917 = vcmask 1046534
    %v1918 = vsel %vm1917, %v1897, %v1916
    %vm1919 = vcmask 1047559
    %v1920 = vsel %vm1919, %v1906, %v1918
    %vm1922 = vcmask 130048
    %1923 = vst.msk [vmem:[#allocation5] sm:$0xff] %vm1922, %v1920
    // Predicated region
    $region30: #{tpu_custom_call.1} parent=1 // pred_check
      _
    $region31: #{tpu_custom_call.1} parent=1 // pred_check_branch
      %1925 = sbr.rel (0) target = $region33
    $region32: #{tpu_custom_call.1} parent=1 // pred_region
      %s1927 = ssub.s32 2048, 2048
      %1928 = vsyncadd [#allocation4], %s1927
      %s1929 = sshll.u32 [#allocation3], 4
      %s1930 = int_to_ptr.vmem [resolvable:$true] %s1929
      %1935 = dma.vmem_to_hbm [thread:$0]  %s1930, 2048, %s7, [#allocation4], 128, 128, 8
    $region33: #{tpu_custom_call.1} parent=1 // pred_fallthru
      _
    // Predicated region
    $region34: #{tpu_custom_call.1} parent=1 // pred_check
      _
    $region35: #{tpu_custom_call.1} parent=1 // pred_check_branch
      %1937 = sbr.rel (0) target = $region37
    $region36: #{tpu_custom_call.1} parent=1 // pred_region
      %s1939 = ssub.s32 128, 128
      %1940 = vsyncadd [#allocation6], %s1939
      %s1942 = sshll.u32 [#allocation5], 4
      %s1943 = int_to_ptr.vmem [resolvable:$true] %s1942
      %1945 = dma.vmem_to_hbm [thread:$0]  %s1943, 128, %s8, [#allocation6]
    $region37: #{tpu_custom_call.1} parent=1 // pred_fallthru
      _
    // Predicated region
    $region38: #{tpu_custom_call.1} parent=1 // pred_check
      _
    $region39: #{tpu_custom_call.1} parent=1 // pred_check_branch
      %1947 = sbr.rel (0) target = $region41
    $region40: #{tpu_custom_call.1} parent=1 // pred_region
      %1948 = dma.done [#allocation4], 2048
    $region41: #{tpu_custom_call.1} parent=1 // pred_fallthru
      _
    // Predicated region
    $region42: #{tpu_custom_call.1} parent=1 // pred_check
      _
    $region43: #{tpu_custom_call.1} parent=1 // pred_check_branch
      %1950 = sbr.rel (0) target = $region45
    $region44: #{tpu_custom_call.1} parent=1 // pred_region
      %1951 = dma.done [#allocation6], 128
    $region45: #{tpu_custom_call.1} parent=1 // pred_fallthru
      _
    %1952 = vsyncpa [#allocation4], 1
    %1953 = vsyncpa [#allocation6], 1

</llo_original>
